<compile_context>
chip_gen: v6e
topology: v6e:2x2x1
jax: 0.10.0
libtpu: 0.0.40
codegen_flags: <defaults>
</compile_context>

<pallas_src>
import functools

import jax
import jax.numpy as jnp
from jax.experimental import pallas as pl
from jax.experimental.pallas import tpu as pltpu

ELMO_DIM = 1024
EMB_DIM = 300
EMB_PAD = 384                       # 300 padded to 3 x 128 lanes
CO = 32
KERNEL_LIST = (1, 2, 3, 5)
CONV_COLS = CO * sum(KERNEL_LIST)   # 352 fused conv columns (11 (k,j) slices x 32)
CONV_COLS_PAD = 384                 # padded to 3 x 128 lanes
CAT_DIM = CO * len(KERNEL_LIST)     # 128 pooled features
N_CLASSES = 6
OUT_PAD = 128                       # lane-dense logits slab


def textcnn_kernel(x_ref, w0_ref, b0_ref, wc_ref, bc_ref, wl_ref, bl_ref, out_ref):
    TB, T, _ = x_ref.shape

    # --- lin_0 (1024 -> 300, padded 384) + ReLU: one bf16 MXU matmul, f32 accumulate.
    x = x_ref[...].reshape(TB * T, ELMO_DIM)                       # bf16
    h = jnp.dot(x, w0_ref[...], preferred_element_type=jnp.float32) + b0_ref[...]
    h = jnp.maximum(h, 0.0).astype(jnp.bfloat16)                   # (TB*T, 384)

    # --- all four convs as ONE lane-dense matmul over the fused (384, 384) weight.
    y = jnp.dot(h, wc_ref[...], preferred_element_type=jnp.float32)
    y = y.reshape(TB, T, CONV_COLS_PAD)                            # (TB, T, 384) f32

    # Rebuild each conv with shifted adds, then max-pool over the sequence.
    # (ReLU is monotone, so bias-add + ReLU commute with the max and are applied once
    #  per conv on the pooled (TB, 32) result instead of per position.)
    pooled = []
    col = 0
    for k in KERNEL_LIST:
        L = T - k + 1
        acc = y[:, 0:L, col:col + CO]                              # j = 0 initializes acc
        for j in range(1, k):
            acc = acc + y[:, j:j + L, col + j * CO: col + (j + 1) * CO]
        pooled.append(jnp.max(acc, axis=1))                        # (TB, 32)
        col += k * CO

    cat = jnp.concatenate(pooled, axis=1)                          # (TB, 128)
    cat = jnp.maximum(cat + bc_ref[...], 0.0)                      # conv bias + ReLU

    # Dropout(p=0.1) is identity at inference.
    logits = jnp.dot(cat.astype(jnp.bfloat16), wl_ref[...],
                     preferred_element_type=jnp.float32) + bl_ref[...]
    out_ref[...] = jax.nn.sigmoid(logits)                          # (TB, 128) lane-dense


@functools.partial(jax.jit, static_argnames=("tb",))
def textcnn_forward(x_elmo, packed, *, tb=8):
    """x_elmo: (B, T, 1024) ELMo representation. Returns (B, 6) sigmoid probabilities."""
    B, T, E = x_elmo.shape
    assert E == ELMO_DIM
    assert T >= max(KERNEL_LIST), "sequence too short for the k=5 conv"

    # Pad batch to a multiple of the batch tile; cast the streamed input to bf16.
    b_pad = pl.cdiv(B, tb) * tb
    if b_pad != B:
        x_elmo = jnp.pad(x_elmo, ((0, b_pad - B), (0, 0), (0, 0)))
    x_bf16 = x_elmo.astype(jnp.bfloat16)

    const2 = lambda i: (0, 0)
    out = pl.pallas_call(
        textcnn_kernel,
        out_shape=jax.ShapeDtypeStruct((b_pad, OUT_PAD), jnp.float32),
        grid_spec=pltpu.PrefetchScalarGridSpec(
            num_scalar_prefetch=0,
            grid=(b_pad // tb,),
            in_specs=[
                # (TB, T, 1024) batch tile streamed HBM->VMEM, double-buffered.
                pl.BlockSpec((tb, T, ELMO_DIM), lambda i: (i, 0, 0)),
                # Weights/biases: constant index_map -> stay VMEM-resident (~1.2 MB bf16).
                pl.BlockSpec((ELMO_DIM, EMB_PAD), const2),
                pl.BlockSpec((1, EMB_PAD), const2),
                pl.BlockSpec((EMB_PAD, CONV_COLS_PAD), const2),
                pl.BlockSpec((1, CAT_DIM), const2),
                pl.BlockSpec((CAT_DIM, OUT_PAD), const2),
                pl.BlockSpec((1, OUT_PAD), const2),
            ],
            out_specs=pl.BlockSpec((tb, OUT_PAD), lambda i: (i, 0)),
        ),
        # Parallel batch axis: shards grid steps across v7x's 2 TensorCores,
        # harmless no-op on v5e/v6e.  Re-derive `tb` for large T on v7x (64 MiB VMEM):
        # per step ~ 2*tb*T*1024*2 B input + tb*T*384*4 B y + ~1.2 MB weights.
        compiler_params=pltpu.CompilerParams(dimension_semantics=("parallel",)),
    )(x_bf16, packed["w0"], packed["b0"], packed["wconv"], packed["bconv"],
      packed["wl"], packed["bl"])

    return out[:B, :N_CLASSES]


def init_raw_params(key):
    """Deterministic params in the PyTorch module's (transposed) layouts.

      lin_0.weight (300, 1024)        -> w0  (1024, 300)
      convs[i].weight (32, 1, k, 300) -> wck (k, 300, 32)
      lin.weight (6, 128)             -> wl  (128, 6)
    """
    keys = jax.random.split(key, 12)
    s = 0.02
    raw = {
        "w0": jax.random.normal(keys[0], (ELMO_DIM, EMB_DIM), jnp.float32) * s,
        "b0": jax.random.normal(keys[1], (1, EMB_DIM), jnp.float32) * s,
        "wl": jax.random.normal(keys[2], (CAT_DIM, N_CLASSES), jnp.float32) * s,
        "bl": jax.random.normal(keys[3], (1, N_CLASSES), jnp.float32) * s,
    }
    for idx, k in enumerate(KERNEL_LIST):
        raw[f"wc{k}"] = jax.random.normal(keys[4 + 2 * idx], (k, EMB_DIM, CO), jnp.float32) * s
        raw[f"bc{k}"] = jax.random.normal(keys[5 + 2 * idx], (1, CO), jnp.float32) * s
    return raw


def pack_params(raw):
    """Pack/pad raw params into the fused, lane-dense, bf16 layouts the kernel uses."""
    w0 = jnp.zeros((ELMO_DIM, EMB_PAD), jnp.float32).at[:, :EMB_DIM].set(raw["w0"])
    b0 = jnp.zeros((1, EMB_PAD), jnp.float32).at[:, :EMB_DIM].set(raw["b0"])

    wc = jnp.zeros((EMB_PAD, CONV_COLS_PAD), jnp.float32)
    bc = jnp.zeros((1, CAT_DIM), jnp.float32)
    col = 0
    for idx, k in enumerate(KERNEL_LIST):
        w_k = raw[f"wc{k}"]                                   # (k, 300, 32)
        for j in range(k):
            wc = wc.at[:EMB_DIM, col + j * CO: col + (j + 1) * CO].set(w_k[j])
        bc = bc.at[0, idx * CO:(idx + 1) * CO].set(raw[f"bc{k}"][0])
        col += k * CO

    wl = jnp.zeros((CAT_DIM, OUT_PAD), jnp.float32).at[:, :N_CLASSES].set(raw["wl"])
    bl = jnp.zeros((1, OUT_PAD), jnp.float32).at[:, :N_CLASSES].set(raw["bl"])

    return {
        "w0": w0.astype(jnp.bfloat16), "b0": b0,
        "wconv": wc.astype(jnp.bfloat16), "bconv": bc,
        "wl": wl.astype(jnp.bfloat16), "bl": bl,
    }


def textcnn_reference(x_elmo, raw):
    """Pure-JAX f32 reference of the PyTorch forward (ELMo output onward)."""
    h = jnp.maximum(jnp.einsum("btk,kd->btd", x_elmo, raw["w0"]) + raw["b0"], 0.0)
    T = x_elmo.shape[1]
    pooled = []
    for k in KERNEL_LIST:
        w = raw[f"wc{k}"]
        L = T - k + 1
        acc = sum(jnp.einsum("btd,do->bto", h[:, j:j + L, :], w[j]) for j in range(k))
        acc = jnp.maximum(acc + raw[f"bc{k}"], 0.0)
        pooled.append(jnp.max(acc, axis=1))
    cat = jnp.concatenate(pooled, axis=1)
    return jax.nn.sigmoid(cat @ raw["wl"] + raw["bl"])


if __name__ == "__main__":
    key = jax.random.PRNGKey(0)
    k_param, k_x = jax.random.split(key)

    B, T = 2, 8                       # small demo shapes (T >= max kernel size 5)
    raw = init_raw_params(k_param)
    packed = pack_params(raw)
    x_elmo = jax.random.normal(k_x, (B, T, ELMO_DIM), jnp.float32)

    out = textcnn_forward(x_elmo, packed, tb=8)
    out = jax.block_until_ready(out)

    ref = textcnn_reference(x_elmo, raw)
    assert out.shape == (B, N_CLASSES)
    assert bool(jnp.all(jnp.isfinite(out)))
    assert bool(jnp.allclose(out, ref, atol=5e-2, rtol=5e-2)), "mismatch vs f32 reference"
    print("KERNEL_OK")
</pallas_src>

<mosaic_0001>
module attributes {stable_mosaic.version = 11 : i64} {
  func.func @textcnn_kernel(%arg0: i32, %arg1: memref<8x8x1024xbf16, #tpu.memory_space<vmem>>, %arg2: memref<1024x384xbf16, #tpu.memory_space<vmem>>, %arg3: memref<1x384xf32, #tpu.memory_space<vmem>>, %arg4: memref<384x384xbf16, #tpu.memory_space<vmem>>, %arg5: memref<1x128xf32, #tpu.memory_space<vmem>>, %arg6: memref<128x128xbf16, #tpu.memory_space<vmem>>, %arg7: memref<1x128xf32, #tpu.memory_space<vmem>>, %arg8: memref<8x128xf32, #tpu.memory_space<vmem>>) attributes {dimension_semantics = [#tpu.dimension_semantics<parallel>], iteration_bounds = array<i64: 1>, scalar_prefetch = 0 : i64, scratch_operands = 0 : i64, tpu.core_type = #tpu.core_type<tc>, window_params = [{transform_indices = @transform_0, window_bounds = array<i64: 8, 8, 1024>}, {pipeline_mode = #tpu.pipeline_mode<synchronous>, transform_indices = @transform_1, window_bounds = array<i64: 1024, 384>}, {pipeline_mode = #tpu.pipeline_mode<synchronous>, transform_indices = @transform_2, window_bounds = array<i64: 1, 384>}, {pipeline_mode = #tpu.pipeline_mode<synchronous>, transform_indices = @transform_3, window_bounds = array<i64: 384, 384>}, {pipeline_mode = #tpu.pipeline_mode<synchronous>, transform_indices = @transform_4, window_bounds = array<i64: 1, 128>}, {pipeline_mode = #tpu.pipeline_mode<synchronous>, transform_indices = @transform_5, window_bounds = array<i64: 128, 128>}, {pipeline_mode = #tpu.pipeline_mode<synchronous>, transform_indices = @transform_6, window_bounds = array<i64: 1, 128>}, {transform_indices = @transform_7, window_bounds = array<i64: 8, 128>}]} {
    %c0 = arith.constant 0 : index
    %c0_0 = arith.constant 0 : index
    %c0_1 = arith.constant 0 : index
    %0 = vector.load %arg1[%c0, %c0_0, %c0_1] : memref<8x8x1024xbf16, #tpu.memory_space<vmem>>, vector<8x8x1024xbf16>
    %1 = vector.shape_cast %0 : vector<8x8x1024xbf16> to vector<64x1024xbf16>
    %c0_2 = arith.constant 0 : index
    %c0_3 = arith.constant 0 : index
    %2 = vector.load %arg2[%c0_2, %c0_3] : memref<1024x384xbf16, #tpu.memory_space<vmem>>, vector<1024x384xbf16>
    %cst = arith.constant dense<0.000000e+00> : vector<64x384xf32>
    %3 = tpu.matmul %1, %2, %cst {dimension_numbers = #tpu.dot_dimension_numbers<[1], [0], [0], [1], [0, 0, 1, 1], [], []>} : vector<64x1024xbf16>, vector<1024x384xbf16>, vector<64x384xf32> -> vector<64x384xf32>
    %c0_4 = arith.constant 0 : index
    %c0_5 = arith.constant 0 : index
    %4 = vector.load %arg3[%c0_4, %c0_5] : memref<1x384xf32, #tpu.memory_space<vmem>>, vector<1x384xf32>
    %5 = vector.broadcast %4 : vector<1x384xf32> to vector<64x384xf32>
    %6 = arith.addf %3, %5 : vector<64x384xf32>
    %cst_6 = arith.constant 0.000000e+00 : f32
    %7 = vector.broadcast %cst_6 : f32 to vector<64x384xf32>
    %8 = arith.maximumf %6, %7 : vector<64x384xf32>
    %9 = arith.truncf %8 : vector<64x384xf32> to vector<64x384xbf16>
    %c0_7 = arith.constant 0 : index
    %c0_8 = arith.constant 0 : index
    %10 = vector.load %arg4[%c0_7, %c0_8] : memref<384x384xbf16, #tpu.memory_space<vmem>>, vector<384x384xbf16>
    %cst_9 = arith.constant dense<0.000000e+00> : vector<64x384xf32>
    %11 = tpu.matmul %9, %10, %cst_9 {dimension_numbers = #tpu.dot_dimension_numbers<[1], [0], [0], [1], [0, 0, 1, 1], [], []>} : vector<64x384xbf16>, vector<384x384xbf16>, vector<64x384xf32> -> vector<64x384xf32>
    %12 = vector.shape_cast %11 : vector<64x384xf32> to vector<8x8x384xf32>
    %13 = vector.extract_strided_slice %12 {offsets = [0, 0, 0], sizes = [8, 8, 32], strides = [1, 1, 1]} : vector<8x8x384xf32> to vector<8x8x32xf32>
    %cst_10 = arith.constant dense<0xFF800000> : vector<8x32xf32>
    %14 = vector.multi_reduction <maximumf>, %13, %cst_10 [1] : vector<8x8x32xf32> to vector<8x32xf32>
    %15 = vector.extract_strided_slice %12 {offsets = [0, 0, 32], sizes = [8, 7, 32], strides = [1, 1, 1]} : vector<8x8x384xf32> to vector<8x7x32xf32>
    %16 = vector.extract_strided_slice %12 {offsets = [0, 1, 64], sizes = [8, 7, 32], strides = [1, 1, 1]} : vector<8x8x384xf32> to vector<8x7x32xf32>
    %17 = arith.addf %15, %16 : vector<8x7x32xf32>
    %cst_11 = arith.constant dense<0xFF800000> : vector<8x32xf32>
    %18 = vector.multi_reduction <maximumf>, %17, %cst_11 [1] : vector<8x7x32xf32> to vector<8x32xf32>
    %19 = vector.extract_strided_slice %12 {offsets = [0, 0, 96], sizes = [8, 6, 32], strides = [1, 1, 1]} : vector<8x8x384xf32> to vector<8x6x32xf32>
    %20 = vector.extract_strided_slice %12 {offsets = [0, 1, 128], sizes = [8, 6, 32], strides = [1, 1, 1]} : vector<8x8x384xf32> to vector<8x6x32xf32>
    %21 = arith.addf %19, %20 : vector<8x6x32xf32>
    %22 = vector.extract_strided_slice %12 {offsets = [0, 2, 160], sizes = [8, 6, 32], strides = [1, 1, 1]} : vector<8x8x384xf32> to vector<8x6x32xf32>
    %23 = arith.addf %21, %22 : vector<8x6x32xf32>
    %cst_12 = arith.constant dense<0xFF800000> : vector<8x32xf32>
    %24 = vector.multi_reduction <maximumf>, %23, %cst_12 [1] : vector<8x6x32xf32> to vector<8x32xf32>
    %25 = vector.extract_strided_slice %12 {offsets = [0, 0, 192], sizes = [8, 4, 32], strides = [1, 1, 1]} : vector<8x8x384xf32> to vector<8x4x32xf32>
    %26 = vector.extract_strided_slice %12 {offsets = [0, 1, 224], sizes = [8, 4, 32], strides = [1, 1, 1]} : vector<8x8x384xf32> to vector<8x4x32xf32>
    %27 = arith.addf %25, %26 : vector<8x4x32xf32>
    %28 = vector.extract_strided_slice %12 {offsets = [0, 2, 256], sizes = [8, 4, 32], strides = [1, 1, 1]} : vector<8x8x384xf32> to vector<8x4x32xf32>
    %29 = arith.addf %27, %28 : vector<8x4x32xf32>
    %30 = vector.extract_strided_slice %12 {offsets = [0, 3, 288], sizes = [8, 4, 32], strides = [1, 1, 1]} : vector<8x8x384xf32> to vector<8x4x32xf32>
    %31 = arith.addf %29, %30 : vector<8x4x32xf32>
    %32 = vector.extract_strided_slice %12 {offsets = [0, 4, 320], sizes = [8, 4, 32], strides = [1, 1, 1]} : vector<8x8x384xf32> to vector<8x4x32xf32>
    %33 = arith.addf %31, %32 : vector<8x4x32xf32>
    %cst_13 = arith.constant dense<0xFF800000> : vector<8x32xf32>
    %34 = vector.multi_reduction <maximumf>, %33, %cst_13 [1] : vector<8x4x32xf32> to vector<8x32xf32>
    %35 = tpu.concatenate %14, %18, %24, %34 in 1 : vector<8x32xf32>, vector<8x32xf32>, vector<8x32xf32>, vector<8x32xf32> -> vector<8x128xf32>
    %c0_14 = arith.constant 0 : index
    %c0_15 = arith.constant 0 : index
    %36 = vector.load %arg5[%c0_14, %c0_15] : memref<1x128xf32, #tpu.memory_space<vmem>>, vector<1x128xf32>
    %37 = vector.broadcast %36 : vector<1x128xf32> to vector<8x128xf32>
    %38 = arith.addf %35, %37 : vector<8x128xf32>
    %cst_16 = arith.constant 0.000000e+00 : f32
    %39 = vector.broadcast %cst_16 : f32 to vector<8x128xf32>
    %40 = arith.maximumf %38, %39 : vector<8x128xf32>
    %41 = arith.truncf %40 : vector<8x128xf32> to vector<8x128xbf16>
    %c0_17 = arith.constant 0 : index
    %c0_18 = arith.constant 0 : index
    %42 = vector.load %arg6[%c0_17, %c0_18] : memref<128x128xbf16, #tpu.memory_space<vmem>>, vector<128x128xbf16>
    %cst_19 = arith.constant dense<0.000000e+00> : vector<8x128xf32>
    %43 = tpu.matmul %41, %42, %cst_19 {dimension_numbers = #tpu.dot_dimension_numbers<[1], [0], [0], [1], [0, 0, 1, 1], [], []>} : vector<8x128xbf16>, vector<128x128xbf16>, vector<8x128xf32> -> vector<8x128xf32>
    %c0_20 = arith.constant 0 : index
    %c0_21 = arith.constant 0 : index
    %44 = vector.load %arg7[%c0_20, %c0_21] : memref<1x128xf32, #tpu.memory_space<vmem>>, vector<1x128xf32>
    %45 = vector.broadcast %44 : vector<1x128xf32> to vector<8x128xf32>
    %46 = arith.addf %43, %45 : vector<8x128xf32>
    %47 = arith.negf %46 : vector<8x128xf32>
    %48 = math.exp %47 : vector<8x128xf32>
    %cst_22 = arith.constant 1.000000e+00 : f32
    %49 = vector.broadcast %cst_22 : f32 to vector<8x128xf32>
    %50 = arith.addf %49, %48 : vector<8x128xf32>
    %51 = arith.divf %49, %50 : vector<8x128xf32>
    %c0_23 = arith.constant 0 : index
    %c0_24 = arith.constant 0 : index
    %52 = vector.load %arg8[%c0_23, %c0_24] : memref<8x128xf32, #tpu.memory_space<vmem>>, vector<8x128xf32>
    tpu.vector_store %arg8[%c0_23, %c0_24], %51 {strides = array<i32>} : memref<8x128xf32, #tpu.memory_space<vmem>>, vector<8x128xf32>,
    return
  }
  func.func @transform_0(%arg0: i32) -> (i32, i32, i32) {
    %c0_i32 = arith.constant 0 : i32
    %c0_i32_0 = arith.constant 0 : i32
    %c0_i32_1 = arith.constant 0 : i32
    return %arg0, %c0_i32, %c0_i32_0 : i32, i32, i32
  }
  func.func @transform_1(%arg0: i32) -> (i32, i32) {
    %c0_i32 = arith.constant 0 : i32
    %c0_i32_0 = arith.constant 0 : i32
    %c0_i32_1 = arith.constant 0 : i32
    return %c0_i32, %c0_i32_0 : i32, i32
  }
  func.func @transform_2(%arg0: i32) -> (i32, i32) {
    %c0_i32 = arith.constant 0 : i32
    %c0_i32_0 = arith.constant 0 : i32
    %c0_i32_1 = arith.constant 0 : i32
    return %c0_i32, %c0_i32_0 : i32, i32
  }
  func.func @transform_3(%arg0: i32) -> (i32, i32) {
    %c0_i32 = arith.constant 0 : i32
    %c0_i32_0 = arith.constant 0 : i32
    %c0_i32_1 = arith.constant 0 : i32
    return %c0_i32, %c0_i32_0 : i32, i32
  }
  func.func @transform_4(%arg0: i32) -> (i32, i32) {
    %c0_i32 = arith.constant 0 : i32
    %c0_i32_0 = arith.constant 0 : i32
    %c0_i32_1 = arith.constant 0 : i32
    return %c0_i32, %c0_i32_0 : i32, i32
  }
  func.func @transform_5(%arg0: i32) -> (i32, i32) {
    %c0_i32 = arith.constant 0 : i32
    %c0_i32_0 = arith.constant 0 : i32
    %c0_i32_1 = arith.constant 0 : i32
    return %c0_i32, %c0_i32_0 : i32, i32
  }
  func.func @transform_6(%arg0: i32) -> (i32, i32) {
    %c0_i32 = arith.constant 0 : i32
    %c0_i32_0 = arith.constant 0 : i32
    %c0_i32_1 = arith.constant 0 : i32
    return %c0_i32, %c0_i32_0 : i32, i32
  }
  func.func @transform_7(%arg0: i32) -> (i32, i32) {
    %c0_i32 = arith.constant 0 : i32
    %c0_i32_0 = arith.constant 0 : i32
    return %arg0, %c0_i32 : i32, i32
  }
}

</mosaic_0001>

<llo_original>
// kernel: textcnn_forward.1
$region0: #{textcnn_forward.1}
  #allocation0 [shape = 'u32[]', space=smem, size = 0x4, offset = 0x4, fixed_abs, tag = 'smem constant byte address 0x4 - core index']
  #allocation1 [shape = 'u32[144,128]{1,0:T(1,128)}', space=vmem, size = 0x12000, scoped, tag = 'internal scratch']
  %s0 = inlined_call_operand.vmem [shape: bf16[8,8,1024], index: 0, kind: input, shape index: {}]
  %s1 = inlined_call_operand.hbm [shape: bf16[1024,384], index: 1, kind: input, shape index: {}]
  %s2 = inlined_call_operand.vmem [shape: f32[1,384], index: 2, kind: input, shape index: {}]
  %s3 = inlined_call_operand.hbm [shape: bf16[384,384], index: 3, kind: input, shape index: {}]
  %s4 = inlined_call_operand.vmem [shape: f32[1,128], index: 4, kind: input, shape index: {}]
  %s5 = inlined_call_operand.vmem [shape: bf16[128,128], index: 5, kind: input, shape index: {}]
  %s6 = inlined_call_operand.vmem [shape: f32[1,128], index: 6, kind: input, shape index: {}]
  %s7 = inlined_call_operand.vmem [shape: f32[8,128], index: 7, kind: output, shape index: {}]
  %s8 = sld [smem:[#allocation0]]
  $region46: #{textcnn_forward.1} parent=0
    _
  %s10 = ssub.s32 1, %s8
  %s11 = scalar_select 0, %s10, %s8
  $region1: #{textcnn_forward.1} parent=0
    #allocation2 [shape = 'u8[786432]{0}', space=vmem, size = 0xc0000, scoped, tag = 'input window, operand 1, single buffered']
    #allocation3 [shape = 's32[1]{0}', space=sflag, size = 0x4, scoped, tag = 'scoped memory for textcnn_forward.1']
    #allocation4 [shape = 'u8[294912]{0}', space=vmem, size = 0x48000, scoped, tag = 'input window, operand 3, single buffered']
    #allocation5 [shape = 's32[1]{0}', space=sflag, size = 0x4, scoped, tag = 'scoped memory for textcnn_forward.1']
    %12 = vsyncpa [#allocation3], 0
    %13 = vsyncpa [#allocation5], 0
    // Predicated region
    $region2: #{textcnn_forward.1} parent=1 // pred_check
      _
    $region3: #{textcnn_forward.1} parent=1 // pred_check_branch
      %15 = sbr.rel (0) target = $region5
    $region4: #{textcnn_forward.1} parent=1 // pred_region
      _
    $region5: #{textcnn_forward.1} parent=1 // pred_fallthru
      _
    // Predicated region
    $region6: #{textcnn_forward.1} parent=1 // pred_check
      _
    $region7: #{textcnn_forward.1} parent=1 // pred_check_branch
      %17 = sbr.rel (0) target = $region9
    $region8: #{textcnn_forward.1} parent=1 // pred_region
      %s19 = ssub.s32 24576, 24576
      %20 = vsyncadd [#allocation3], %s19
      %s21 = sshll.u32 [#allocation2], 4
      %s22 = int_to_ptr.vmem [resolvable:$true] %s21
      %27 = dma.hbm_to_vmem [thread:$0]  %s1, 24576, %s22, [#allocation3], 192, 192, 12
    $region9: #{textcnn_forward.1} parent=1 // pred_fallthru
      _
    // Predicated region
    $region10: #{textcnn_forward.1} parent=1 // pred_check
      _
    $region11: #{textcnn_forward.1} parent=1 // pred_check_branch
      %29 = sbr.rel (0) target = $region13
    $region12: #{textcnn_forward.1} parent=1 // pred_region
      _
    $region13: #{textcnn_forward.1} parent=1 // pred_fallthru
      _
    // Predicated region
    $region14: #{textcnn_forward.1} parent=1 // pred_check
      _
    $region15: #{textcnn_forward.1} parent=1 // pred_check_branch
      %31 = sbr.rel (0) target = $region17
    $region16: #{textcnn_forward.1} parent=1 // pred_region
      %s33 = ssub.s32 9216, 9216
      %34 = vsyncadd [#allocation5], %s33
      %s35 = sshll.u32 [#allocation4], 4
      %s36 = int_to_ptr.vmem [resolvable:$true] %s35
      %41 = dma.hbm_to_vmem [thread:$0]  %s3, 9216, %s36, [#allocation5], 192, 192, 12
    $region17: #{textcnn_forward.1} parent=1 // pred_fallthru
      _
    // Predicated region
    $region18: #{textcnn_forward.1} parent=1 // pred_check
      _
    $region19: #{textcnn_forward.1} parent=1 // pred_check_branch
      %43 = sbr.rel (0) target = $region21
    $region20: #{textcnn_forward.1} parent=1 // pred_region
      _
    $region21: #{textcnn_forward.1} parent=1 // pred_fallthru
      _
    // Predicated region
    $region22: #{textcnn_forward.1} parent=1 // pred_check
      _
    $region23: #{textcnn_forward.1} parent=1 // pred_check_branch
      %45 = sbr.rel (0) target = $region25
    $region24: #{textcnn_forward.1} parent=1 // pred_region
      _
    $region25: #{textcnn_forward.1} parent=1 // pred_fallthru
      _
    // Predicated region
    $region26: #{textcnn_forward.1} parent=1 // pred_check
      _
    $region27: #{textcnn_forward.1} parent=1 // pred_check_branch
      %47 = sbr.rel (0) target = $region29
    $region28: #{textcnn_forward.1} parent=1 // pred_region
      _
    $region29: #{textcnn_forward.1} parent=1 // pred_fallthru
      _
    // Predicated region
    $region30: #{textcnn_forward.1} parent=1 // pred_check
      _
    $region31: #{textcnn_forward.1} parent=1 // pred_check_branch
      %49 = sbr.rel (0) target = $region33
    $region32: #{textcnn_forward.1} parent=1 // pred_region
      %50 = dma.done [#allocation3], 24576
    $region33: #{textcnn_forward.1} parent=1 // pred_fallthru
      _
    // Predicated region
    $region34: #{textcnn_forward.1} parent=1 // pred_check
      _
    $region35: #{textcnn_forward.1} parent=1 // pred_check_branch
      %52 = sbr.rel (0) target = $region37
    $region36: #{textcnn_forward.1} parent=1 // pred_region
      %53 = dma.done [#allocation5], 9216
    $region37: #{textcnn_forward.1} parent=1 // pred_fallthru
      _
    %v55 = vld [vmem:[%s0] sm:$0xff]
    %v56 = vld [vmem:[%s0 + $0x8] sm:$0xff]
    %v57 = vld [vmem:[%s0 + $0x10] sm:$0xff]
    %v58 = vld [vmem:[%s0 + $0x18] sm:$0xff]
    %v59 = vld [vmem:[%s0 + $0x20] sm:$0xff]
    %v60 = vld [vmem:[%s0 + $0x28] sm:$0xff]
    %v61 = vld [vmem:[%s0 + $0x30] sm:$0xff]
    %v62 = vld [vmem:[%s0 + $0x38] sm:$0xff]
    %v63 = vld [vmem:[%s0 + $0x40] sm:$0xff]
    %v64 = vld [vmem:[%s0 + $0x48] sm:$0xff]
    %v65 = vld [vmem:[%s0 + $0x50] sm:$0xff]
    %v66 = vld [vmem:[%s0 + $0x58] sm:$0xff]
    %v67 = vld [vmem:[%s0 + $0x60] sm:$0xff]
    %v68 = vld [vmem:[%s0 + $0x68] sm:$0xff]
    %v69 = vld [vmem:[%s0 + $0x70] sm:$0xff]
    %v70 = vld [vmem:[%s0 + $0x78] sm:$0xff]
    %v71 = vld [vmem:[%s0 + $0x80] sm:$0xff]
    %v72 = vld [vmem:[%s0 + $0x88] sm:$0xff]
    %v73 = vld [vmem:[%s0 + $0x90] sm:$0xff]
    %v74 = vld [vmem:[%s0 + $0x98] sm:$0xff]
    %v75 = vld [vmem:[%s0 + $0xa0] sm:$0xff]
    %v76 = vld [vmem:[%s0 + $0xa8] sm:$0xff]
    %v77 = vld [vmem:[%s0 + $0xb0] sm:$0xff]
    %v78 = vld [vmem:[%s0 + $0xb8] sm:$0xff]
    %v79 = vld [vmem:[%s0 + $0xc0] sm:$0xff]
    %v80 = vld [vmem:[%s0 + $0xc8] sm:$0xff]
    %v81 = vld [vmem:[%s0 + $0xd0] sm:$0xff]
    %v82 = vld [vmem:[%s0 + $0xd8] sm:$0xff]
    %v83 = vld [vmem:[%s0 + $0xe0] sm:$0xff]
    %v84 = vld [vmem:[%s0 + $0xe8] sm:$0xff]
    %v85 = vld [vmem:[%s0 + $0xf0] sm:$0xff]
    %v86 = vld [vmem:[%s0 + $0xf8] sm:$0xff]
    %v87 = vld [vmem:[#allocation2] sm:$0xff]
    %v88 = vld [vmem:[#allocation2 + $0x8] sm:$0xf]
    %v89 = vld [vmem:[#allocation2 + $0xc] sm:$0xff]
    %v90 = vld [vmem:[#allocation2 + $0x14] sm:$0xf]
    %v91 = vld [vmem:[#allocation2 + $0x18] sm:$0xff]
    %v92 = vld [vmem:[#allocation2 + $0x20] sm:$0xf]
    %v93 = vld [vmem:[#allocation2 + $0x24] sm:$0xff]
    %v94 = vld [vmem:[#allocation2 + $0x2c] sm:$0xf]
    %v95 = vld [vmem:[#allocation2 + $0x30] sm:$0xff]
    %v96 = vld [vmem:[#allocation2 + $0x38] sm:$0xf]
    %v97 = vld [vmem:[#allocation2 + $0x3c] sm:$0xff]
    %v98 = vld [vmem:[#allocation2 + $0x44] sm:$0xf]
    %v99 = vld [vmem:[#allocation2 + $0x48] sm:$0xff]
    %v100 = vld [vmem:[#allocation2 + $0x50] sm:$0xf]
    %v101 = vld [vmem:[#allocation2 + $0x54] sm:$0xff]
    %v102 = vld [vmem:[#allocation2 + $0x5c] sm:$0xf]
    %v103 = vld [vmem:[#allocation2 + $0x60] sm:$0xff]
    %v104 = vld [vmem:[#allocation2 + $0x68] sm:$0xf]
    %v105 = vld [vmem:[#allocation2 + $0x6c] sm:$0xff]
    %v106 = vld [vmem:[#allocation2 + $0x74] sm:$0xf]
    %v107 = vld [vmem:[#allocation2 + $0x78] sm:$0xff]
    %v108 = vld [vmem:[#allocation2 + $0x80] sm:$0xf]
    %v109 = vld [vmem:[#allocation2 + $0x84] sm:$0xff]
    %v110 = vld [vmem:[#allocation2 + $0x8c] sm:$0xf]
    %v111 = vld [vmem:[#allocation2 + $0x90] sm:$0xff]
    %v112 = vld [vmem:[#allocation2 + $0x98] sm:$0xf]
    %v113 = vld [vmem:[#allocation2 + $0x9c] sm:$0xff]
    %v114 = vld [vmem:[#allocation2 + $0xa4] sm:$0xf]
    %v115 = vld [vmem:[#allocation2 + $0xa8] sm:$0xff]
    %v116 = vld [vmem:[#allocation2 + $0xb0] sm:$0xf]
    %v117 = vld [vmem:[#allocation2 + $0xb4] sm:$0xff]
    %v118 = vld [vmem:[#allocation2 + $0xbc] sm:$0xf]
    %v119 = vld [vmem:[#allocation2 + $0xc0] sm:$0xff]
    %v120 = vld [vmem:[#allocation2 + $0xc8] sm:$0xf]
    %v121 = vld [vmem:[#allocation2 + $0xcc] sm:$0xff]
    %v122 = vld [vmem:[#allocation2 + $0xd4] sm:$0xf]
    %v123 = vld [vmem:[#allocation2 + $0xd8] sm:$0xff]
    %v124 = vld [vmem:[#allocation2 + $0xe0] sm:$0xf]
    %v125 = vld [vmem:[#allocation2 + $0xe4] sm:$0xff]
    %v126 = vld [vmem:[#allocation2 + $0xec] sm:$0xf]
    %v127 = vld [vmem:[#allocation2 + $0xf0] sm:$0xff]
    %v128 = vld [vmem:[#allocation2 + $0xf8] sm:$0xf]
    %v129 = vld [vmem:[#allocation2 + $0xfc] sm:$0xff]
    %v130 = vld [vmem:[#allocation2 + $0x104] sm:$0xf]
    %v131 = vld [vmem:[#allocation2 + $0x108] sm:$0xff]
    %v132 = vld [vmem:[#allocation2 + $0x110] sm:$0xf]
    %v133 = vld [vmem:[#allocation2 + $0x114] sm:$0xff]
    %v134 = vld [vmem:[#allocation2 + $0x11c] sm:$0xf]
    %v135 = vld [vmem:[#allocation2 + $0x120] sm:$0xff]
    %v136 = vld [vmem:[#allocation2 + $0x128] sm:$0xf]
    %v137 = vld [vmem:[#allocation2 + $0x12c] sm:$0xff]
    %v138 = vld [vmem:[#allocation2 + $0x134] sm:$0xf]
    %v139 = vld [vmem:[#allocation2 + $0x138] sm:$0xff]
    %v140 = vld [vmem:[#allocation2 + $0x140] sm:$0xf]
    %v141 = vld [vmem:[#allocation2 + $0x144] sm:$0xff]
    %v142 = vld [vmem:[#allocation2 + $0x14c] sm:$0xf]
    %v143 = vld [vmem:[#allocation2 + $0x150] sm:$0xff]
    %v144 = vld [vmem:[#allocation2 + $0x158] sm:$0xf]
    %v145 = vld [vmem:[#allocation2 + $0x15c] sm:$0xff]
    %v146 = vld [vmem:[#allocation2 + $0x164] sm:$0xf]
    %v147 = vld [vmem:[#allocation2 + $0x168] sm:$0xff]
    %v148 = vld [vmem:[#allocation2 + $0x170] sm:$0xf]
    %v149 = vld [vmem:[#allocation2 + $0x174] sm:$0xff]
    %v150 = vld [vmem:[#allocation2 + $0x17c] sm:$0xf]
    %v151 = vld [vmem:[#allocation2 + $0x180] sm:$0xff]
    %v152 = vld [vmem:[#allocation2 + $0x188] sm:$0xf]
    %v153 = vld [vmem:[#allocation2 + $0x18c] sm:$0xff]
    %v154 = vld [vmem:[#allocation2 + $0x194] sm:$0xf]
    %v155 = vld [vmem:[#allocation2 + $0x198] sm:$0xff]
    %v156 = vld [vmem:[#allocation2 + $0x1a0] sm:$0xf]
    %v157 = vld [vmem:[#allocation2 + $0x1a4] sm:$0xff]
    %v158 = vld [vmem:[#allocation2 + $0x1ac] sm:$0xf]
    %v159 = vld [vmem:[#allocation2 + $0x1b0] sm:$0xff]
    %v160 = vld [vmem:[#allocation2 + $0x1b8] sm:$0xf]
    %v161 = vld [vmem:[#allocation2 + $0x1bc] sm:$0xff]
    %v162 = vld [vmem:[#allocation2 + $0x1c4] sm:$0xf]
    %v163 = vld [vmem:[#allocation2 + $0x1c8] sm:$0xff]
    %v164 = vld [vmem:[#allocation2 + $0x1d0] sm:$0xf]
    %v165 = vld [vmem:[#allocation2 + $0x1d4] sm:$0xff]
    %v166 = vld [vmem:[#allocation2 + $0x1dc] sm:$0xf]
    %v167 = vld [vmem:[#allocation2 + $0x1e0] sm:$0xff]
    %v168 = vld [vmem:[#allocation2 + $0x1e8] sm:$0xf]
    %v169 = vld [vmem:[#allocation2 + $0x1ec] sm:$0xff]
    %v170 = vld [vmem:[#allocation2 + $0x1f4] sm:$0xf]
    %v171 = vld [vmem:[#allocation2 + $0x1f8] sm:$0xff]
    %v172 = vld [vmem:[#allocation2 + $0x200] sm:$0xf]
    %v173 = vld [vmem:[#allocation2 + $0x204] sm:$0xff]
    %v174 = vld [vmem:[#allocation2 + $0x20c] sm:$0xf]
    %v175 = vld [vmem:[#allocation2 + $0x210] sm:$0xff]
    %v176 = vld [vmem:[#allocation2 + $0x218] sm:$0xf]
    %v177 = vld [vmem:[#allocation2 + $0x21c] sm:$0xff]
    %v178 = vld [vmem:[#allocation2 + $0x224] sm:$0xf]
    %v179 = vld [vmem:[#allocation2 + $0x228] sm:$0xff]
    %v180 = vld [vmem:[#allocation2 + $0x230] sm:$0xf]
    %v181 = vld [vmem:[#allocation2 + $0x234] sm:$0xff]
    %v182 = vld [vmem:[#allocation2 + $0x23c] sm:$0xf]
    %v183 = vld [vmem:[#allocation2 + $0x240] sm:$0xff]
    %v184 = vld [vmem:[#allocation2 + $0x248] sm:$0xf]
    %v185 = vld [vmem:[#allocation2 + $0x24c] sm:$0xff]
    %v186 = vld [vmem:[#allocation2 + $0x254] sm:$0xf]
    %v187 = vld [vmem:[#allocation2 + $0x258] sm:$0xff]
    %v188 = vld [vmem:[#allocation2 + $0x260] sm:$0xf]
    %v189 = vld [vmem:[#allocation2 + $0x264] sm:$0xff]
    %v190 = vld [vmem:[#allocation2 + $0x26c] sm:$0xf]
    %v191 = vld [vmem:[#allocation2 + $0x270] sm:$0xff]
    %v192 = vld [vmem:[#allocation2 + $0x278] sm:$0xf]
    %v193 = vld [vmem:[#allocation2 + $0x27c] sm:$0xff]
    %v194 = vld [vmem:[#allocation2 + $0x284] sm:$0xf]
    %v195 = vld [vmem:[#allocation2 + $0x288] sm:$0xff]
    %v196 = vld [vmem:[#allocation2 + $0x290] sm:$0xf]
    %v197 = vld [vmem:[#allocation2 + $0x294] sm:$0xff]
    %v198 = vld [vmem:[#allocation2 + $0x29c] sm:$0xf]
    %v199 = vld [vmem:[#allocation2 + $0x2a0] sm:$0xff]
    %v200 = vld [vmem:[#allocation2 + $0x2a8] sm:$0xf]
    %v201 = vld [vmem:[#allocation2 + $0x2ac] sm:$0xff]
    %v202 = vld [vmem:[#allocation2 + $0x2b4] sm:$0xf]
    %v203 = vld [vmem:[#allocation2 + $0x2b8] sm:$0xff]
    %v204 = vld [vmem:[#allocation2 + $0x2c0] sm:$0xf]
    %v205 = vld [vmem:[#allocation2 + $0x2c4] sm:$0xff]
    %v206 = vld [vmem:[#allocation2 + $0x2cc] sm:$0xf]
    %v207 = vld [vmem:[#allocation2 + $0x2d0] sm:$0xff]
    %v208 = vld [vmem:[#allocation2 + $0x2d8] sm:$0xf]
    %v209 = vld [vmem:[#allocation2 + $0x2dc] sm:$0xff]
    %v210 = vld [vmem:[#allocation2 + $0x2e4] sm:$0xf]
    %v211 = vld [vmem:[#allocation2 + $0x2e8] sm:$0xff]
    %v212 = vld [vmem:[#allocation2 + $0x2f0] sm:$0xf]
    %v213 = vld [vmem:[#allocation2 + $0x2f4] sm:$0xff]
    %v214 = vld [vmem:[#allocation2 + $0x2fc] sm:$0xf]
    %v215 = vld [vmem:[#allocation2 + $0x300] sm:$0xff]
    %v216 = vld [vmem:[#allocation2 + $0x308] sm:$0xf]
    %v217 = vld [vmem:[#allocation2 + $0x30c] sm:$0xff]
    %v218 = vld [vmem:[#allocation2 + $0x314] sm:$0xf]
    %v219 = vld [vmem:[#allocation2 + $0x318] sm:$0xff]
    %v220 = vld [vmem:[#allocation2 + $0x320] sm:$0xf]
    %v221 = vld [vmem:[#allocation2 + $0x324] sm:$0xff]
    %v222 = vld [vmem:[#allocation2 + $0x32c] sm:$0xf]
    %v223 = vld [vmem:[#allocation2 + $0x330] sm:$0xff]
    %v224 = vld [vmem:[#allocation2 + $0x338] sm:$0xf]
    %v225 = vld [vmem:[#allocation2 + $0x33c] sm:$0xff]
    %v226 = vld [vmem:[#allocation2 + $0x344] sm:$0xf]
    %v227 = vld [vmem:[#allocation2 + $0x348] sm:$0xff]
    %v228 = vld [vmem:[#allocation2 + $0x350] sm:$0xf]
    %v229 = vld [vmem:[#allocation2 + $0x354] sm:$0xff]
    %v230 = vld [vmem:[#allocation2 + $0x35c] sm:$0xf]
    %v231 = vld [vmem:[#allocation2 + $0x360] sm:$0xff]
    %v232 = vld [vmem:[#allocation2 + $0x368] sm:$0xf]
    %v233 = vld [vmem:[#allocation2 + $0x36c] sm:$0xff]
    %v234 = vld [vmem:[#allocation2 + $0x374] sm:$0xf]
    %v235 = vld [vmem:[#allocation2 + $0x378] sm:$0xff]
    %v236 = vld [vmem:[#allocation2 + $0x380] sm:$0xf]
    %v237 = vld [vmem:[#allocation2 + $0x384] sm:$0xff]
    %v238 = vld [vmem:[#allocation2 + $0x38c] sm:$0xf]
    %v239 = vld [vmem:[#allocation2 + $0x390] sm:$0xff]
    %v240 = vld [vmem:[#allocation2 + $0x398] sm:$0xf]
    %v241 = vld [vmem:[#allocation2 + $0x39c] sm:$0xff]
    %v242 = vld [vmem:[#allocation2 + $0x3a4] sm:$0xf]
    %v243 = vld [vmem:[#allocation2 + $0x3a8] sm:$0xff]
    %v244 = vld [vmem:[#allocation2 + $0x3b0] sm:$0xf]
    %v245 = vld [vmem:[#allocation2 + $0x3b4] sm:$0xff]
    %v246 = vld [vmem:[#allocation2 + $0x3bc] sm:$0xf]
    %v247 = vld [vmem:[#allocation2 + $0x3c0] sm:$0xff]
    %v248 = vld [vmem:[#allocation2 + $0x3c8] sm:$0xf]
    %v249 = vld [vmem:[#allocation2 + $0x3cc] sm:$0xff]
    %v250 = vld [vmem:[#allocation2 + $0x3d4] sm:$0xf]
    %v251 = vld [vmem:[#allocation2 + $0x3d8] sm:$0xff]
    %v252 = vld [vmem:[#allocation2 + $0x3e0] sm:$0xf]
    %v253 = vld [vmem:[#allocation2 + $0x3e4] sm:$0xff]
    %v254 = vld [vmem:[#allocation2 + $0x3ec] sm:$0xf]
    %v255 = vld [vmem:[#allocation2 + $0x3f0] sm:$0xff]
    %v256 = vld [vmem:[#allocation2 + $0x3f8] sm:$0xf]
    %v257 = vld [vmem:[#allocation2 + $0x3fc] sm:$0xff]
    %v258 = vld [vmem:[#allocation2 + $0x404] sm:$0xf]
    %v259 = vld [vmem:[#allocation2 + $0x408] sm:$0xff]
    %v260 = vld [vmem:[#allocation2 + $0x410] sm:$0xf]
    %v261 = vld [vmem:[#allocation2 + $0x414] sm:$0xff]
    %v262 = vld [vmem:[#allocation2 + $0x41c] sm:$0xf]
    %v263 = vld [vmem:[#allocation2 + $0x420] sm:$0xff]
    %v264 = vld [vmem:[#allocation2 + $0x428] sm:$0xf]
    %v265 = vld [vmem:[#allocation2 + $0x42c] sm:$0xff]
    %v266 = vld [vmem:[#allocation2 + $0x434] sm:$0xf]
    %v267 = vld [vmem:[#allocation2 + $0x438] sm:$0xff]
    %v268 = vld [vmem:[#allocation2 + $0x440] sm:$0xf]
    %v269 = vld [vmem:[#allocation2 + $0x444] sm:$0xff]
    %v270 = vld [vmem:[#allocation2 + $0x44c] sm:$0xf]
    %v271 = vld [vmem:[#allocation2 + $0x450] sm:$0xff]
    %v272 = vld [vmem:[#allocation2 + $0x458] sm:$0xf]
    %v273 = vld [vmem:[#allocation2 + $0x45c] sm:$0xff]
    %v274 = vld [vmem:[#allocation2 + $0x464] sm:$0xf]
    %v275 = vld [vmem:[#allocation2 + $0x468] sm:$0xff]
    %v276 = vld [vmem:[#allocation2 + $0x470] sm:$0xf]
    %v277 = vld [vmem:[#allocation2 + $0x474] sm:$0xff]
    %v278 = vld [vmem:[#allocation2 + $0x47c] sm:$0xf]
    %v279 = vld [vmem:[#allocation2 + $0x480] sm:$0xff]
    %v280 = vld [vmem:[#allocation2 + $0x488] sm:$0xf]
    %v281 = vld [vmem:[#allocation2 + $0x48c] sm:$0xff]
    %v282 = vld [vmem:[#allocation2 + $0x494] sm:$0xf]
    %v283 = vld [vmem:[#allocation2 + $0x498] sm:$0xff]
    %v284 = vld [vmem:[#allocation2 + $0x4a0] sm:$0xf]
    %v285 = vld [vmem:[#allocation2 + $0x4a4] sm:$0xff]
    %v286 = vld [vmem:[#allocation2 + $0x4ac] sm:$0xf]
    %v287 = vld [vmem:[#allocation2 + $0x4b0] sm:$0xff]
    %v288 = vld [vmem:[#allocation2 + $0x4b8] sm:$0xf]
    %v289 = vld [vmem:[#allocation2 + $0x4bc] sm:$0xff]
    %v290 = vld [vmem:[#allocation2 + $0x4c4] sm:$0xf]
    %v291 = vld [vmem:[#allocation2 + $0x4c8] sm:$0xff]
    %v292 = vld [vmem:[#allocation2 + $0x4d0] sm:$0xf]
    %v293 = vld [vmem:[#allocation2 + $0x4d4] sm:$0xff]
    %v294 = vld [vmem:[#allocation2 + $0x4dc] sm:$0xf]
    %v295 = vld [vmem:[#allocation2 + $0x4e0] sm:$0xff]
    %v296 = vld [vmem:[#allocation2 + $0x4e8] sm:$0xf]
    %v297 = vld [vmem:[#allocation2 + $0x4ec] sm:$0xff]
    %v298 = vld [vmem:[#allocation2 + $0x4f4] sm:$0xf]
    %v299 = vld [vmem:[#allocation2 + $0x4f8] sm:$0xff]
    %v300 = vld [vmem:[#allocation2 + $0x500] sm:$0xf]
    %v301 = vld [vmem:[#allocation2 + $0x504] sm:$0xff]
    %v302 = vld [vmem:[#allocation2 + $0x50c] sm:$0xf]
    %v303 = vld [vmem:[#allocation2 + $0x510] sm:$0xff]
    %v304 = vld [vmem:[#allocation2 + $0x518] sm:$0xf]
    %v305 = vld [vmem:[#allocation2 + $0x51c] sm:$0xff]
    %v306 = vld [vmem:[#allocation2 + $0x524] sm:$0xf]
    %v307 = vld [vmem:[#allocation2 + $0x528] sm:$0xff]
    %v308 = vld [vmem:[#allocation2 + $0x530] sm:$0xf]
    %v309 = vld [vmem:[#allocation2 + $0x534] sm:$0xff]
    %v310 = vld [vmem:[#allocation2 + $0x53c] sm:$0xf]
    %v311 = vld [vmem:[#allocation2 + $0x540] sm:$0xff]
    %v312 = vld [vmem:[#allocation2 + $0x548] sm:$0xf]
    %v313 = vld [vmem:[#allocation2 + $0x54c] sm:$0xff]
    %v314 = vld [vmem:[#allocation2 + $0x554] sm:$0xf]
    %v315 = vld [vmem:[#allocation2 + $0x558] sm:$0xff]
    %v316 = vld [vmem:[#allocation2 + $0x560] sm:$0xf]
    %v317 = vld [vmem:[#allocation2 + $0x564] sm:$0xff]
    %v318 = vld [vmem:[#allocation2 + $0x56c] sm:$0xf]
    %v319 = vld [vmem:[#allocation2 + $0x570] sm:$0xff]
    %v320 = vld [vmem:[#allocation2 + $0x578] sm:$0xf]
    %v321 = vld [vmem:[#allocation2 + $0x57c] sm:$0xff]
    %v322 = vld [vmem:[#allocation2 + $0x584] sm:$0xf]
    %v323 = vld [vmem:[#allocation2 + $0x588] sm:$0xff]
    %v324 = vld [vmem:[#allocation2 + $0x590] sm:$0xf]
    %v325 = vld [vmem:[#allocation2 + $0x594] sm:$0xff]
    %v326 = vld [vmem:[#allocation2 + $0x59c] sm:$0xf]
    %v327 = vld [vmem:[#allocation2 + $0x5a0] sm:$0xff]
    %v328 = vld [vmem:[#allocation2 + $0x5a8] sm:$0xf]
    %v329 = vld [vmem:[#allocation2 + $0x5ac] sm:$0xff]
    %v330 = vld [vmem:[#allocation2 + $0x5b4] sm:$0xf]
    %v331 = vld [vmem:[#allocation2 + $0x5b8] sm:$0xff]
    %v332 = vld [vmem:[#allocation2 + $0x5c0] sm:$0xf]
    %v333 = vld [vmem:[#allocation2 + $0x5c4] sm:$0xff]
    %v334 = vld [vmem:[#allocation2 + $0x5cc] sm:$0xf]
    %v335 = vld [vmem:[#allocation2 + $0x5d0] sm:$0xff]
    %v336 = vld [vmem:[#allocation2 + $0x5d8] sm:$0xf]
    %v337 = vld [vmem:[#allocation2 + $0x5dc] sm:$0xff]
    %v338 = vld [vmem:[#allocation2 + $0x5e4] sm:$0xf]
    %v339 = vld [vmem:[#allocation2 + $0x5e8] sm:$0xff]
    %v340 = vld [vmem:[#allocation2 + $0x5f0] sm:$0xf]
    %v341 = vld [vmem:[#allocation2 + $0x5f4] sm:$0xff]
    %v342 = vld [vmem:[#allocation2 + $0x5fc] sm:$0xf]
    %v343 = vld [vmem:[%s2] sm:$0x7]
    %v345 = vlaneseq
    %v346 = vshrl.u32 %v345, 7
    %v347 = vsub.s32 0, %v346
    %v348 = vrot.slane %v343, %v347
    %v349 = vlaneseq
    %v350 = vshrl.u32 %v349, 7
    %v351 = vsub.s32 1, %v350
    %v352 = vrot.slane %v343, %v351
    %v353 = vlaneseq
    %v354 = vshrl.u32 %v353, 7
    %v355 = vsub.s32 2, %v354
    %v356 = vrot.slane %v343, %v355
    %v392 = vunpack.c.l.b16 %v55
    %v393 = vunpack.c.h.b16 %v55
    %v394 = vunpack.c.l.b16 %v56
    %v395 = vunpack.c.h.b16 %v56
    %v396 = vunpack.c.l.b16 %v57
    %v397 = vunpack.c.h.b16 %v57
    %v398 = vunpack.c.l.b16 %v58
    %v399 = vunpack.c.h.b16 %v58
    %v400 = vunpack.c.l.b16 %v59
    %v401 = vunpack.c.h.b16 %v59
    %v402 = vunpack.c.l.b16 %v60
    %v403 = vunpack.c.h.b16 %v60
    %v404 = vunpack.c.l.b16 %v61
    %v405 = vunpack.c.h.b16 %v61
    %v406 = vunpack.c.l.b16 %v62
    %v407 = vunpack.c.h.b16 %v62
    %v408 = vunpack.c.l.b16 %v63
    %v409 = vunpack.c.h.b16 %v63
    %v410 = vunpack.c.l.b16 %v64
    %v411 = vunpack.c.h.b16 %v64
    %v412 = vunpack.c.l.b16 %v65
    %v413 = vunpack.c.h.b16 %v65
    %v414 = vunpack.c.l.b16 %v66
    %v415 = vunpack.c.h.b16 %v66
    %v416 = vunpack.c.l.b16 %v67
    %v417 = vunpack.c.h.b16 %v67
    %v418 = vunpack.c.l.b16 %v68
    %v419 = vunpack.c.h.b16 %v68
    %v420 = vunpack.c.l.b16 %v69
    %v421 = vunpack.c.h.b16 %v69
    %v422 = vunpack.c.l.b16 %v70
    %v423 = vunpack.c.h.b16 %v70
    %v424 = vunpack.c.l.b16 %v71
    %v425 = vunpack.c.h.b16 %v71
    %v426 = vunpack.c.l.b16 %v72
    %v427 = vunpack.c.h.b16 %v72
    %v428 = vunpack.c.l.b16 %v73
    %v429 = vunpack.c.h.b16 %v73
    %v430 = vunpack.c.l.b16 %v74
    %v431 = vunpack.c.h.b16 %v74
    %v432 = vunpack.c.l.b16 %v75
    %v433 = vunpack.c.h.b16 %v75
    %v434 = vunpack.c.l.b16 %v76
    %v435 = vunpack.c.h.b16 %v76
    %v436 = vunpack.c.l.b16 %v77
    %v437 = vunpack.c.h.b16 %v77
    %v438 = vunpack.c.l.b16 %v78
    %v439 = vunpack.c.h.b16 %v78
    %v440 = vunpack.c.l.b16 %v79
    %v441 = vunpack.c.h.b16 %v79
    %v442 = vunpack.c.l.b16 %v80
    %v443 = vunpack.c.h.b16 %v80
    %v444 = vunpack.c.l.b16 %v81
    %v445 = vunpack.c.h.b16 %v81
    %v446 = vunpack.c.l.b16 %v82
    %v447 = vunpack.c.h.b16 %v82
    %v448 = vunpack.c.l.b16 %v83
    %v449 = vunpack.c.h.b16 %v83
    %v450 = vunpack.c.l.b16 %v84
    %v451 = vunpack.c.h.b16 %v84
    %v452 = vunpack.c.l.b16 %v85
    %v453 = vunpack.c.h.b16 %v85
    %v454 = vunpack.c.l.b16 %v86
    %v455 = vunpack.c.h.b16 %v86
    %v456 = vpack.c.b16 %v400, %v392
    %v457 = vpack.c.b16 %v401, %v393
    %v458 = vpack.c.b16 %v402, %v394
    %v459 = vpack.c.b16 %v403, %v395
    %v460 = vpack.c.b16 %v404, %v396
    %v461 = vpack.c.b16 %v405, %v397
    %v462 = vpack.c.b16 %v406, %v398
    %v463 = vpack.c.b16 %v407, %v399
    %v464 = vpack.c.b16 %v416, %v408
    %v465 = vpack.c.b16 %v417, %v409
    %v466 = vpack.c.b16 %v418, %v410
    %v467 = vpack.c.b16 %v419, %v411
    %v468 = vpack.c.b16 %v420, %v412
    %v469 = vpack.c.b16 %v421, %v413
    %v470 = vpack.c.b16 %v422, %v414
    %v471 = vpack.c.b16 %v423, %v415
    %v472 = vpack.c.b16 %v432, %v424
    %v473 = vpack.c.b16 %v433, %v425
    %v474 = vpack.c.b16 %v434, %v426
    %v475 = vpack.c.b16 %v435, %v427
    %v476 = vpack.c.b16 %v436, %v428
    %v477 = vpack.c.b16 %v437, %v429
    %v478 = vpack.c.b16 %v438, %v430
    %v479 = vpack.c.b16 %v439, %v431
    %v480 = vpack.c.b16 %v448, %v440
    %v481 = vpack.c.b16 %v449, %v441
    %v482 = vpack.c.b16 %v450, %v442
    %v483 = vpack.c.b16 %v451, %v443
    %v484 = vpack.c.b16 %v452, %v444
    %v485 = vpack.c.b16 %v453, %v445
    %v486 = vpack.c.b16 %v454, %v446
    %v487 = vpack.c.b16 %v455, %v447
    %v776 = vunpack.c.l.b16 %v87
    %v777 = vunpack.c.h.b16 %v87
    %v778 = vunpack.c.l.b16 %v88
    %v779 = vunpack.c.l.b16 %v89
    %v780 = vunpack.c.h.b16 %v89
    %v781 = vunpack.c.l.b16 %v90
    %v782 = vunpack.c.l.b16 %v91
    %v783 = vunpack.c.h.b16 %v91
    %v784 = vunpack.c.l.b16 %v92
    %v785 = vunpack.c.l.b16 %v93
    %v786 = vunpack.c.h.b16 %v93
    %v787 = vunpack.c.l.b16 %v94
    %v788 = vunpack.c.l.b16 %v95
    %v789 = vunpack.c.h.b16 %v95
    %v790 = vunpack.c.l.b16 %v96
    %v791 = vunpack.c.l.b16 %v97
    %v792 = vunpack.c.h.b16 %v97
    %v793 = vunpack.c.l.b16 %v98
    %v794 = vunpack.c.l.b16 %v99
    %v795 = vunpack.c.h.b16 %v99
    %v796 = vunpack.c.l.b16 %v100
    %v797 = vunpack.c.l.b16 %v101
    %v798 = vunpack.c.h.b16 %v101
    %v799 = vunpack.c.l.b16 %v102
    %v800 = vunpack.c.l.b16 %v103
    %v801 = vunpack.c.h.b16 %v103
    %v802 = vunpack.c.l.b16 %v104
    %v803 = vunpack.c.l.b16 %v105
    %v804 = vunpack.c.h.b16 %v105
    %v805 = vunpack.c.l.b16 %v106
    %v806 = vunpack.c.l.b16 %v107
    %v807 = vunpack.c.h.b16 %v107
    %v808 = vunpack.c.l.b16 %v108
    %v809 = vunpack.c.l.b16 %v109
    %v810 = vunpack.c.h.b16 %v109
    %v811 = vunpack.c.l.b16 %v110
    %v812 = vunpack.c.l.b16 %v111
    %v813 = vunpack.c.h.b16 %v111
    %v814 = vunpack.c.l.b16 %v112
    %v815 = vunpack.c.l.b16 %v113
    %v816 = vunpack.c.h.b16 %v113
    %v817 = vunpack.c.l.b16 %v114
    %v818 = vunpack.c.l.b16 %v115
    %v819 = vunpack.c.h.b16 %v115
    %v820 = vunpack.c.l.b16 %v116
    %v821 = vunpack.c.l.b16 %v117
    %v822 = vunpack.c.h.b16 %v117
    %v823 = vunpack.c.l.b16 %v118
    %v824 = vunpack.c.l.b16 %v119
    %v825 = vunpack.c.h.b16 %v119
    %v826 = vunpack.c.l.b16 %v120
    %v827 = vunpack.c.l.b16 %v121
    %v828 = vunpack.c.h.b16 %v121
    %v829 = vunpack.c.l.b16 %v122
    %v830 = vunpack.c.l.b16 %v123
    %v831 = vunpack.c.h.b16 %v123
    %v832 = vunpack.c.l.b16 %v124
    %v833 = vunpack.c.l.b16 %v125
    %v834 = vunpack.c.h.b16 %v125
    %v835 = vunpack.c.l.b16 %v126
    %v836 = vunpack.c.l.b16 %v127
    %v837 = vunpack.c.h.b16 %v127
    %v838 = vunpack.c.l.b16 %v128
    %v839 = vunpack.c.l.b16 %v129
    %v840 = vunpack.c.h.b16 %v129
    %v841 = vunpack.c.l.b16 %v130
    %v842 = vunpack.c.l.b16 %v131
    %v843 = vunpack.c.h.b16 %v131
    %v844 = vunpack.c.l.b16 %v132
    %v845 = vunpack.c.l.b16 %v133
    %v846 = vunpack.c.h.b16 %v133
    %v847 = vunpack.c.l.b16 %v134
    %v848 = vunpack.c.l.b16 %v135
    %v849 = vunpack.c.h.b16 %v135
    %v850 = vunpack.c.l.b16 %v136
    %v851 = vunpack.c.l.b16 %v137
    %v852 = vunpack.c.h.b16 %v137
    %v853 = vunpack.c.l.b16 %v138
    %v854 = vunpack.c.l.b16 %v139
    %v855 = vunpack.c.h.b16 %v139
    %v856 = vunpack.c.l.b16 %v140
    %v857 = vunpack.c.l.b16 %v141
    %v858 = vunpack.c.h.b16 %v141
    %v859 = vunpack.c.l.b16 %v142
    %v860 = vunpack.c.l.b16 %v143
    %v861 = vunpack.c.h.b16 %v143
    %v862 = vunpack.c.l.b16 %v144
    %v863 = vunpack.c.l.b16 %v145
    %v864 = vunpack.c.h.b16 %v145
    %v865 = vunpack.c.l.b16 %v146
    %v866 = vunpack.c.l.b16 %v147
    %v867 = vunpack.c.h.b16 %v147
    %v868 = vunpack.c.l.b16 %v148
    %v869 = vunpack.c.l.b16 %v149
    %v870 = vunpack.c.h.b16 %v149
    %v871 = vunpack.c.l.b16 %v150
    %v872 = vunpack.c.l.b16 %v151
    %v873 = vunpack.c.h.b16 %v151
    %v874 = vunpack.c.l.b16 %v152
    %v875 = vunpack.c.l.b16 %v153
    %v876 = vunpack.c.h.b16 %v153
    %v877 = vunpack.c.l.b16 %v154
    %v878 = vunpack.c.l.b16 %v155
    %v879 = vunpack.c.h.b16 %v155
    %v880 = vunpack.c.l.b16 %v156
    %v881 = vunpack.c.l.b16 %v157
    %v882 = vunpack.c.h.b16 %v157
    %v883 = vunpack.c.l.b16 %v158
    %v884 = vunpack.c.l.b16 %v159
    %v885 = vunpack.c.h.b16 %v159
    %v886 = vunpack.c.l.b16 %v160
    %v887 = vunpack.c.l.b16 %v161
    %v888 = vunpack.c.h.b16 %v161
    %v889 = vunpack.c.l.b16 %v162
    %v890 = vunpack.c.l.b16 %v163
    %v891 = vunpack.c.h.b16 %v163
    %v892 = vunpack.c.l.b16 %v164
    %v893 = vunpack.c.l.b16 %v165
    %v894 = vunpack.c.h.b16 %v165
    %v895 = vunpack.c.l.b16 %v166
    %v896 = vunpack.c.l.b16 %v167
    %v897 = vunpack.c.h.b16 %v167
    %v898 = vunpack.c.l.b16 %v168
    %v899 = vunpack.c.l.b16 %v169
    %v900 = vunpack.c.h.b16 %v169
    %v901 = vunpack.c.l.b16 %v170
    %v902 = vunpack.c.l.b16 %v171
    %v903 = vunpack.c.h.b16 %v171
    %v904 = vunpack.c.l.b16 %v172
    %v905 = vunpack.c.l.b16 %v173
    %v906 = vunpack.c.h.b16 %v173
    %v907 = vunpack.c.l.b16 %v174
    %v908 = vunpack.c.l.b16 %v175
    %v909 = vunpack.c.h.b16 %v175
    %v910 = vunpack.c.l.b16 %v176
    %v911 = vunpack.c.l.b16 %v177
    %v912 = vunpack.c.h.b16 %v177
    %v913 = vunpack.c.l.b16 %v178
    %v914 = vunpack.c.l.b16 %v179
    %v915 = vunpack.c.h.b16 %v179
    %v916 = vunpack.c.l.b16 %v180
    %v917 = vunpack.c.l.b16 %v181
    %v918 = vunpack.c.h.b16 %v181
    %v919 = vunpack.c.l.b16 %v182
    %v920 = vunpack.c.l.b16 %v183
    %v921 = vunpack.c.h.b16 %v183
    %v922 = vunpack.c.l.b16 %v184
    %v923 = vunpack.c.l.b16 %v185
    %v924 = vunpack.c.h.b16 %v185
    %v925 = vunpack.c.l.b16 %v186
    %v926 = vunpack.c.l.b16 %v187
    %v927 = vunpack.c.h.b16 %v187
    %v928 = vunpack.c.l.b16 %v188
    %v929 = vunpack.c.l.b16 %v189
    %v930 = vunpack.c.h.b16 %v189
    %v931 = vunpack.c.l.b16 %v190
    %v932 = vunpack.c.l.b16 %v191
    %v933 = vunpack.c.h.b16 %v191
    %v934 = vunpack.c.l.b16 %v192
    %v935 = vunpack.c.l.b16 %v193
    %v936 = vunpack.c.h.b16 %v193
    %v937 = vunpack.c.l.b16 %v194
    %v938 = vunpack.c.l.b16 %v195
    %v939 = vunpack.c.h.b16 %v195
    %v940 = vunpack.c.l.b16 %v196
    %v941 = vunpack.c.l.b16 %v197
    %v942 = vunpack.c.h.b16 %v197
    %v943 = vunpack.c.l.b16 %v198
    %v944 = vunpack.c.l.b16 %v199
    %v945 = vunpack.c.h.b16 %v199
    %v946 = vunpack.c.l.b16 %v200
    %v947 = vunpack.c.l.b16 %v201
    %v948 = vunpack.c.h.b16 %v201
    %v949 = vunpack.c.l.b16 %v202
    %v950 = vunpack.c.l.b16 %v203
    %v951 = vunpack.c.h.b16 %v203
    %v952 = vunpack.c.l.b16 %v204
    %v953 = vunpack.c.l.b16 %v205
    %v954 = vunpack.c.h.b16 %v205
    %v955 = vunpack.c.l.b16 %v206
    %v956 = vunpack.c.l.b16 %v207
    %v957 = vunpack.c.h.b16 %v207
    %v958 = vunpack.c.l.b16 %v208
    %v959 = vunpack.c.l.b16 %v209
    %v960 = vunpack.c.h.b16 %v209
    %v961 = vunpack.c.l.b16 %v210
    %v962 = vunpack.c.l.b16 %v211
    %v963 = vunpack.c.h.b16 %v211
    %v964 = vunpack.c.l.b16 %v212
    %v965 = vunpack.c.l.b16 %v213
    %v966 = vunpack.c.h.b16 %v213
    %v967 = vunpack.c.l.b16 %v214
    %v968 = vunpack.c.l.b16 %v215
    %v969 = vunpack.c.h.b16 %v215
    %v970 = vunpack.c.l.b16 %v216
    %v971 = vunpack.c.l.b16 %v217
    %v972 = vunpack.c.h.b16 %v217
    %v973 = vunpack.c.l.b16 %v218
    %v974 = vunpack.c.l.b16 %v219
    %v975 = vunpack.c.h.b16 %v219
    %v976 = vunpack.c.l.b16 %v220
    %v977 = vunpack.c.l.b16 %v221
    %v978 = vunpack.c.h.b16 %v221
    %v979 = vunpack.c.l.b16 %v222
    %v980 = vunpack.c.l.b16 %v223
    %v981 = vunpack.c.h.b16 %v223
    %v982 = vunpack.c.l.b16 %v224
    %v983 = vunpack.c.l.b16 %v225
    %v984 = vunpack.c.h.b16 %v225
    %v985 = vunpack.c.l.b16 %v226
    %v986 = vunpack.c.l.b16 %v227
    %v987 = vunpack.c.h.b16 %v227
    %v988 = vunpack.c.l.b16 %v228
    %v989 = vunpack.c.l.b16 %v229
    %v990 = vunpack.c.h.b16 %v229
    %v991 = vunpack.c.l.b16 %v230
    %v992 = vunpack.c.l.b16 %v231
    %v993 = vunpack.c.h.b16 %v231
    %v994 = vunpack.c.l.b16 %v232
    %v995 = vunpack.c.l.b16 %v233
    %v996 = vunpack.c.h.b16 %v233
    %v997 = vunpack.c.l.b16 %v234
    %v998 = vunpack.c.l.b16 %v235
    %v999 = vunpack.c.h.b16 %v235
    %v1000 = vunpack.c.l.b16 %v236
    %v1001 = vunpack.c.l.b16 %v237
    %v1002 = vunpack.c.h.b16 %v237
    %v1003 = vunpack.c.l.b16 %v238
    %v1004 = vunpack.c.l.b16 %v239
    %v1005 = vunpack.c.h.b16 %v239
    %v1006 = vunpack.c.l.b16 %v240
    %v1007 = vunpack.c.l.b16 %v241
    %v1008 = vunpack.c.h.b16 %v241
    %v1009 = vunpack.c.l.b16 %v242
    %v1010 = vunpack.c.l.b16 %v243
    %v1011 = vunpack.c.h.b16 %v243
    %v1012 = vunpack.c.l.b16 %v244
    %v1013 = vunpack.c.l.b16 %v245
    %v1014 = vunpack.c.h.b16 %v245
    %v1015 = vunpack.c.l.b16 %v246
    %v1016 = vunpack.c.l.b16 %v247
    %v1017 = vunpack.c.h.b16 %v247
    %v1018 = vunpack.c.l.b16 %v248
    %v1019 = vunpack.c.l.b16 %v249
    %v1020 = vunpack.c.h.b16 %v249
    %v1021 = vunpack.c.l.b16 %v250
    %v1022 = vunpack.c.l.b16 %v251
    %v1023 = vunpack.c.h.b16 %v251
    %v1024 = vunpack.c.l.b16 %v252
    %v1025 = vunpack.c.l.b16 %v253
    %v1026 = vunpack.c.h.b16 %v253
    %v1027 = vunpack.c.l.b16 %v254
    %v1028 = vunpack.c.l.b16 %v255
    %v1029 = vunpack.c.h.b16 %v255
    %v1030 = vunpack.c.l.b16 %v256
    %v1031 = vunpack.c.l.b16 %v257
    %v1032 = vunpack.c.h.b16 %v257
    %v1033 = vunpack.c.l.b16 %v258
    %v1034 = vunpack.c.l.b16 %v259
    %v1035 = vunpack.c.h.b16 %v259
    %v1036 = vunpack.c.l.b16 %v260
    %v1037 = vunpack.c.l.b16 %v261
    %v1038 = vunpack.c.h.b16 %v261
    %v1039 = vunpack.c.l.b16 %v262
    %v1040 = vunpack.c.l.b16 %v263
    %v1041 = vunpack.c.h.b16 %v263
    %v1042 = vunpack.c.l.b16 %v264
    %v1043 = vunpack.c.l.b16 %v265
    %v1044 = vunpack.c.h.b16 %v265
    %v1045 = vunpack.c.l.b16 %v266
    %v1046 = vunpack.c.l.b16 %v267
    %v1047 = vunpack.c.h.b16 %v267
    %v1048 = vunpack.c.l.b16 %v268
    %v1049 = vunpack.c.l.b16 %v269
    %v1050 = vunpack.c.h.b16 %v269
    %v1051 = vunpack.c.l.b16 %v270
    %v1052 = vunpack.c.l.b16 %v271
    %v1053 = vunpack.c.h.b16 %v271
    %v1054 = vunpack.c.l.b16 %v272
    %v1055 = vunpack.c.l.b16 %v273
    %v1056 = vunpack.c.h.b16 %v273
    %v1057 = vunpack.c.l.b16 %v274
    %v1058 = vunpack.c.l.b16 %v275
    %v1059 = vunpack.c.h.b16 %v275
    %v1060 = vunpack.c.l.b16 %v276
    %v1061 = vunpack.c.l.b16 %v277
    %v1062 = vunpack.c.h.b16 %v277
    %v1063 = vunpack.c.l.b16 %v278
    %v1064 = vunpack.c.l.b16 %v279
    %v1065 = vunpack.c.h.b16 %v279
    %v1066 = vunpack.c.l.b16 %v280
    %v1067 = vunpack.c.l.b16 %v281
    %v1068 = vunpack.c.h.b16 %v281
    %v1069 = vunpack.c.l.b16 %v282
    %v1070 = vunpack.c.l.b16 %v283
    %v1071 = vunpack.c.h.b16 %v283
    %v1072 = vunpack.c.l.b16 %v284
    %v1073 = vunpack.c.l.b16 %v285
    %v1074 = vunpack.c.h.b16 %v285
    %v1075 = vunpack.c.l.b16 %v286
    %v1076 = vunpack.c.l.b16 %v287
    %v1077 = vunpack.c.h.b16 %v287
    %v1078 = vunpack.c.l.b16 %v288
    %v1079 = vunpack.c.l.b16 %v289
    %v1080 = vunpack.c.h.b16 %v289
    %v1081 = vunpack.c.l.b16 %v290
    %v1082 = vunpack.c.l.b16 %v291
    %v1083 = vunpack.c.h.b16 %v291
    %v1084 = vunpack.c.l.b16 %v292
    %v1085 = vunpack.c.l.b16 %v293
    %v1086 = vunpack.c.h.b16 %v293
    %v1087 = vunpack.c.l.b16 %v294
    %v1088 = vunpack.c.l.b16 %v295
    %v1089 = vunpack.c.h.b16 %v295
    %v1090 = vunpack.c.l.b16 %v296
    %v1091 = vunpack.c.l.b16 %v297
    %v1092 = vunpack.c.h.b16 %v297
    %v1093 = vunpack.c.l.b16 %v298
    %v1094 = vunpack.c.l.b16 %v299
    %v1095 = vunpack.c.h.b16 %v299
    %v1096 = vunpack.c.l.b16 %v300
    %v1097 = vunpack.c.l.b16 %v301
    %v1098 = vunpack.c.h.b16 %v301
    %v1099 = vunpack.c.l.b16 %v302
    %v1100 = vunpack.c.l.b16 %v303
    %v1101 = vunpack.c.h.b16 %v303
    %v1102 = vunpack.c.l.b16 %v304
    %v1103 = vunpack.c.l.b16 %v305
    %v1104 = vunpack.c.h.b16 %v305
    %v1105 = vunpack.c.l.b16 %v306
    %v1106 = vunpack.c.l.b16 %v307
    %v1107 = vunpack.c.h.b16 %v307
    %v1108 = vunpack.c.l.b16 %v308
    %v1109 = vunpack.c.l.b16 %v309
    %v1110 = vunpack.c.h.b16 %v309
    %v1111 = vunpack.c.l.b16 %v310
    %v1112 = vunpack.c.l.b16 %v311
    %v1113 = vunpack.c.h.b16 %v311
    %v1114 = vunpack.c.l.b16 %v312
    %v1115 = vunpack.c.l.b16 %v313
    %v1116 = vunpack.c.h.b16 %v313
    %v1117 = vunpack.c.l.b16 %v314
    %v1118 = vunpack.c.l.b16 %v315
    %v1119 = vunpack.c.h.b16 %v315
    %v1120 = vunpack.c.l.b16 %v316
    %v1121 = vunpack.c.l.b16 %v317
    %v1122 = vunpack.c.h.b16 %v317
    %v1123 = vunpack.c.l.b16 %v318
    %v1124 = vunpack.c.l.b16 %v319
    %v1125 = vunpack.c.h.b16 %v319
    %v1126 = vunpack.c.l.b16 %v320
    %v1127 = vunpack.c.l.b16 %v321
    %v1128 = vunpack.c.h.b16 %v321
    %v1129 = vunpack.c.l.b16 %v322
    %v1130 = vunpack.c.l.b16 %v323
    %v1131 = vunpack.c.h.b16 %v323
    %v1132 = vunpack.c.l.b16 %v324
    %v1133 = vunpack.c.l.b16 %v325
    %v1134 = vunpack.c.h.b16 %v325
    %v1135 = vunpack.c.l.b16 %v326
    %v1136 = vunpack.c.l.b16 %v327
    %v1137 = vunpack.c.h.b16 %v327
    %v1138 = vunpack.c.l.b16 %v328
    %v1139 = vunpack.c.l.b16 %v329
    %v1140 = vunpack.c.h.b16 %v329
    %v1141 = vunpack.c.l.b16 %v330
    %v1142 = vunpack.c.l.b16 %v331
    %v1143 = vunpack.c.h.b16 %v331
    %v1144 = vunpack.c.l.b16 %v332
    %v1145 = vunpack.c.l.b16 %v333
    %v1146 = vunpack.c.h.b16 %v333
    %v1147 = vunpack.c.l.b16 %v334
    %v1148 = vunpack.c.l.b16 %v335
    %v1149 = vunpack.c.h.b16 %v335
    %v1150 = vunpack.c.l.b16 %v336
    %v1151 = vunpack.c.l.b16 %v337
    %v1152 = vunpack.c.h.b16 %v337
    %v1153 = vunpack.c.l.b16 %v338
    %v1154 = vunpack.c.l.b16 %v339
    %v1155 = vunpack.c.h.b16 %v339
    %v1156 = vunpack.c.l.b16 %v340
    %v1157 = vunpack.c.l.b16 %v341
    %v1158 = vunpack.c.h.b16 %v341
    %v1159 = vunpack.c.l.b16 %v342
    %v1160 = vpack.c.b16 %v779, %v776
    %v1161 = vpack.c.b16 %v780, %v777
    %v1162 = vpack.c.b16 %v781, %v778
    %v1163 = vpack.c.b16 %v785, %v782
    %v1164 = vpack.c.b16 %v786, %v783
    %v1165 = vpack.c.b16 %v787, %v784
    %v1166 = vpack.c.b16 %v791, %v788
    %v1167 = vpack.c.b16 %v792, %v789
    %v1168 = vpack.c.b16 %v793, %v790
    %v1169 = vpack.c.b16 %v797, %v794
    %v1170 = vpack.c.b16 %v798, %v795
    %v1171 = vpack.c.b16 %v799, %v796
    %v1172 = vpack.c.b16 %v803, %v800
    %v1173 = vpack.c.b16 %v804, %v801
    %v1174 = vpack.c.b16 %v805, %v802
    %v1175 = vpack.c.b16 %v809, %v806
    %v1176 = vpack.c.b16 %v810, %v807
    %v1177 = vpack.c.b16 %v811, %v808
    %v1178 = vpack.c.b16 %v815, %v812
    %v1179 = vpack.c.b16 %v816, %v813
    %v1180 = vpack.c.b16 %v817, %v814
    %v1181 = vpack.c.b16 %v821, %v818
    %v1182 = vpack.c.b16 %v822, %v819
    %v1183 = vpack.c.b16 %v823, %v820
    %v1184 = vpack.c.b16 %v827, %v824
    %v1185 = vpack.c.b16 %v828, %v825
    %v1186 = vpack.c.b16 %v829, %v826
    %v1187 = vpack.c.b16 %v833, %v830
    %v1188 = vpack.c.b16 %v834, %v831
    %v1189 = vpack.c.b16 %v835, %v832
    %v1190 = vpack.c.b16 %v839, %v836
    %v1191 = vpack.c.b16 %v840, %v837
    %v1192 = vpack.c.b16 %v841, %v838
    %v1193 = vpack.c.b16 %v845, %v842
    %v1194 = vpack.c.b16 %v846, %v843
    %v1195 = vpack.c.b16 %v847, %v844
    %v1196 = vpack.c.b16 %v851, %v848
    %v1197 = vpack.c.b16 %v852, %v849
    %v1198 = vpack.c.b16 %v853, %v850
    %v1199 = vpack.c.b16 %v857, %v854
    %v1200 = vpack.c.b16 %v858, %v855
    %v1201 = vpack.c.b16 %v859, %v856
    %v1202 = vpack.c.b16 %v863, %v860
    %v1203 = vpack.c.b16 %v864, %v861
    %v1204 = vpack.c.b16 %v865, %v862
    %v1205 = vpack.c.b16 %v869, %v866
    %v1206 = vpack.c.b16 %v870, %v867
    %v1207 = vpack.c.b16 %v871, %v868
    %v1208 = vpack.c.b16 %v875, %v872
    %v1209 = vpack.c.b16 %v876, %v873
    %v1210 = vpack.c.b16 %v877, %v874
    %v1211 = vpack.c.b16 %v881, %v878
    %v1212 = vpack.c.b16 %v882, %v879
    %v1213 = vpack.c.b16 %v883, %v880
    %v1214 = vpack.c.b16 %v887, %v884
    %v1215 = vpack.c.b16 %v888, %v885
    %v1216 = vpack.c.b16 %v889, %v886
    %v1217 = vpack.c.b16 %v893, %v890
    %v1218 = vpack.c.b16 %v894, %v891
    %v1219 = vpack.c.b16 %v895, %v892
    %v1220 = vpack.c.b16 %v899, %v896
    %v1221 = vpack.c.b16 %v900, %v897
    %v1222 = vpack.c.b16 %v901, %v898
    %v1223 = vpack.c.b16 %v905, %v902
    %v1224 = vpack.c.b16 %v906, %v903
    %v1225 = vpack.c.b16 %v907, %v904
    %v1226 = vpack.c.b16 %v911, %v908
    %v1227 = vpack.c.b16 %v912, %v909
    %v1228 = vpack.c.b16 %v913, %v910
    %v1229 = vpack.c.b16 %v917, %v914
    %v1230 = vpack.c.b16 %v918, %v915
    %v1231 = vpack.c.b16 %v919, %v916
    %v1232 = vpack.c.b16 %v923, %v920
    %v1233 = vpack.c.b16 %v924, %v921
    %v1234 = vpack.c.b16 %v925, %v922
    %v1235 = vpack.c.b16 %v929, %v926
    %v1236 = vpack.c.b16 %v930, %v927
    %v1237 = vpack.c.b16 %v931, %v928
    %v1238 = vpack.c.b16 %v935, %v932
    %v1239 = vpack.c.b16 %v936, %v933
    %v1240 = vpack.c.b16 %v937, %v934
    %v1241 = vpack.c.b16 %v941, %v938
    %v1242 = vpack.c.b16 %v942, %v939
    %v1243 = vpack.c.b16 %v943, %v940
    %v1244 = vpack.c.b16 %v947, %v944
    %v1245 = vpack.c.b16 %v948, %v945
    %v1246 = vpack.c.b16 %v949, %v946
    %v1247 = vpack.c.b16 %v953, %v950
    %v1248 = vpack.c.b16 %v954, %v951
    %v1249 = vpack.c.b16 %v955, %v952
    %v1250 = vpack.c.b16 %v959, %v956
    %v1251 = vpack.c.b16 %v960, %v957
    %v1252 = vpack.c.b16 %v961, %v958
    %v1253 = vpack.c.b16 %v965, %v962
    %v1254 = vpack.c.b16 %v966, %v963
    %v1255 = vpack.c.b16 %v967, %v964
    %v1256 = vpack.c.b16 %v971, %v968
    %v1257 = vpack.c.b16 %v972, %v969
    %v1258 = vpack.c.b16 %v973, %v970
    %v1259 = vpack.c.b16 %v977, %v974
    %v1260 = vpack.c.b16 %v978, %v975
    %v1261 = vpack.c.b16 %v979, %v976
    %v1262 = vpack.c.b16 %v983, %v980
    %v1263 = vpack.c.b16 %v984, %v981
    %v1264 = vpack.c.b16 %v985, %v982
    %v1265 = vpack.c.b16 %v989, %v986
    %v1266 = vpack.c.b16 %v990, %v987
    %v1267 = vpack.c.b16 %v991, %v988
    %v1268 = vpack.c.b16 %v995, %v992
    %v1269 = vpack.c.b16 %v996, %v993
    %v1270 = vpack.c.b16 %v997, %v994
    %v1271 = vpack.c.b16 %v1001, %v998
    %v1272 = vpack.c.b16 %v1002, %v999
    %v1273 = vpack.c.b16 %v1003, %v1000
    %v1274 = vpack.c.b16 %v1007, %v1004
    %v1275 = vpack.c.b16 %v1008, %v1005
    %v1276 = vpack.c.b16 %v1009, %v1006
    %v1277 = vpack.c.b16 %v1013, %v1010
    %v1278 = vpack.c.b16 %v1014, %v1011
    %v1279 = vpack.c.b16 %v1015, %v1012
    %v1280 = vpack.c.b16 %v1019, %v1016
    %v1281 = vpack.c.b16 %v1020, %v1017
    %v1282 = vpack.c.b16 %v1021, %v1018
    %v1283 = vpack.c.b16 %v1025, %v1022
    %v1284 = vpack.c.b16 %v1026, %v1023
    %v1285 = vpack.c.b16 %v1027, %v1024
    %v1286 = vpack.c.b16 %v1031, %v1028
    %v1287 = vpack.c.b16 %v1032, %v1029
    %v1288 = vpack.c.b16 %v1033, %v1030
    %v1289 = vpack.c.b16 %v1037, %v1034
    %v1290 = vpack.c.b16 %v1038, %v1035
    %v1291 = vpack.c.b16 %v1039, %v1036
    %v1292 = vpack.c.b16 %v1043, %v1040
    %v1293 = vpack.c.b16 %v1044, %v1041
    %v1294 = vpack.c.b16 %v1045, %v1042
    %v1295 = vpack.c.b16 %v1049, %v1046
    %v1296 = vpack.c.b16 %v1050, %v1047
    %v1297 = vpack.c.b16 %v1051, %v1048
    %v1298 = vpack.c.b16 %v1055, %v1052
    %v1299 = vpack.c.b16 %v1056, %v1053
    %v1300 = vpack.c.b16 %v1057, %v1054
    %v1301 = vpack.c.b16 %v1061, %v1058
    %v1302 = vpack.c.b16 %v1062, %v1059
    %v1303 = vpack.c.b16 %v1063, %v1060
    %v1304 = vpack.c.b16 %v1067, %v1064
    %v1305 = vpack.c.b16 %v1068, %v1065
    %v1306 = vpack.c.b16 %v1069, %v1066
    %v1307 = vpack.c.b16 %v1073, %v1070
    %v1308 = vpack.c.b16 %v1074, %v1071
    %v1309 = vpack.c.b16 %v1075, %v1072
    %v1310 = vpack.c.b16 %v1079, %v1076
    %v1311 = vpack.c.b16 %v1080, %v1077
    %v1312 = vpack.c.b16 %v1081, %v1078
    %v1313 = vpack.c.b16 %v1085, %v1082
    %v1314 = vpack.c.b16 %v1086, %v1083
    %v1315 = vpack.c.b16 %v1087, %v1084
    %v1316 = vpack.c.b16 %v1091, %v1088
    %v1317 = vpack.c.b16 %v1092, %v1089
    %v1318 = vpack.c.b16 %v1093, %v1090
    %v1319 = vpack.c.b16 %v1097, %v1094
    %v1320 = vpack.c.b16 %v1098, %v1095
    %v1321 = vpack.c.b16 %v1099, %v1096
    %v1322 = vpack.c.b16 %v1103, %v1100
    %v1323 = vpack.c.b16 %v1104, %v1101
    %v1324 = vpack.c.b16 %v1105, %v1102
    %v1325 = vpack.c.b16 %v1109, %v1106
    %v1326 = vpack.c.b16 %v1110, %v1107
    %v1327 = vpack.c.b16 %v1111, %v1108
    %v1328 = vpack.c.b16 %v1115, %v1112
    %v1329 = vpack.c.b16 %v1116, %v1113
    %v1330 = vpack.c.b16 %v1117, %v1114
    %v1331 = vpack.c.b16 %v1121, %v1118
    %v1332 = vpack.c.b16 %v1122, %v1119
    %v1333 = vpack.c.b16 %v1123, %v1120
    %v1334 = vpack.c.b16 %v1127, %v1124
    %v1335 = vpack.c.b16 %v1128, %v1125
    %v1336 = vpack.c.b16 %v1129, %v1126
    %v1337 = vpack.c.b16 %v1133, %v1130
    %v1338 = vpack.c.b16 %v1134, %v1131
    %v1339 = vpack.c.b16 %v1135, %v1132
    %v1340 = vpack.c.b16 %v1139, %v1136
    %v1341 = vpack.c.b16 %v1140, %v1137
    %v1342 = vpack.c.b16 %v1141, %v1138
    %v1343 = vpack.c.b16 %v1145, %v1142
    %v1344 = vpack.c.b16 %v1146, %v1143
    %v1345 = vpack.c.b16 %v1147, %v1144
    %v1346 = vpack.c.b16 %v1151, %v1148
    %v1347 = vpack.c.b16 %v1152, %v1149
    %v1348 = vpack.c.b16 %v1153, %v1150
    %v1349 = vpack.c.b16 %v1157, %v1154
    %v1350 = vpack.c.b16 %v1158, %v1155
    %v1351 = vpack.c.b16 %v1159, %v1156
    %1544 = vmatprep.subr.bf16.mxu0 %v1182
    %1545 = vmatpush1.bf16.msra.mxu0 %v1181
    %1546 = vmatprep.subr.bf16.mxu0 %v1179
    %1547 = vmatpush1.bf16.msra.mxu0 %v1178
    %1548 = vmatprep.subr.bf16.mxu0 %v1176
    %1549 = vmatpush1.bf16.msra.mxu0 %v1175
    %1550 = vmatprep.subr.bf16.mxu0 %v1173
    %1551 = vmatpush1.bf16.msra.mxu0 %v1172
    %1552 = vmatprep.subr.bf16.mxu0 %v1170
    %1553 = vmatpush1.bf16.msra.mxu0 %v1169
    %1554 = vmatprep.subr.bf16.mxu0 %v1167
    %1555 = vmatpush1.bf16.msra.mxu0 %v1166
    %1556 = vmatprep.subr.bf16.mxu0 %v1164
    %1557 = vmatpush1.bf16.msra.mxu0 %v1163
    %1558 = vmatprep.subr.bf16.mxu0 %v1161
    %1559 = vmatpush1.bf16.msra.mxu0 %v1160
    %1560 = vmatprep.subr.bf16.mxu0 %v1206
    %1561 = vmatpush2.bf16.msra.mxu0 %v1205
    %1562 = vmatprep.subr.bf16.mxu0 %v1203
    %1563 = vmatpush2.bf16.msra.mxu0 %v1202
    %1564 = vmatprep.subr.bf16.mxu0 %v1200
    %1565 = vmatpush2.bf16.msra.mxu0 %v1199
    %1566 = vmatprep.subr.bf16.mxu0 %v1197
    %1567 = vmatpush2.bf16.msra.mxu0 %v1196
    %1568 = vmatprep.subr.bf16.mxu0 %v1194
    %1569 = vmatpush2.bf16.msra.mxu0 %v1193
    %1570 = vmatprep.subr.bf16.mxu0 %v1191
    %1571 = vmatpush2.bf16.msra.mxu0 %v1190
    %1572 = vmatprep.subr.bf16.mxu0 %v1188
    %1573 = vmatpush2.bf16.msra.mxu0 %v1187
    %1574 = vmatprep.subr.bf16.mxu0 %v1185
    %1575 = vmatpush2.bf16.msra.mxu0 %v1184
    %1576 = vmatprep.mubr.bf16.mxu0 %v457
    %1577 = vmatmul.mubr.bf16.gmra.mxu0 %v456
    %v1578 = vpop.f32.mrf.mxu0
    %v1579 = vadd.f32 %v348, %v1578
    %v1580 = vpop.f32.mrf.mxu0
    %v1581 = vadd.f32 %v352, %v1580
    %v1582 = vpop.f32.mrf.mxu0
    %v1583 = vadd.f32 %v348, %v1582
    %v1584 = vpop.f32.mrf.mxu0
    %v1585 = vadd.f32 %v352, %v1584
    %1586 = vmatprep.mubr.bf16.mxu0 %v465
    %1587 = vmatmul.mubr.bf16.gmra.mxu0 %v464
    %v1588 = vpop.f32.mrf.mxu0
    %v1589 = vadd.f32 %v348, %v1588
    %v1590 = vpop.f32.mrf.mxu0
    %v1591 = vadd.f32 %v352, %v1590
    %v1592 = vpop.f32.mrf.mxu0
    %v1593 = vadd.f32 %v348, %v1592
    %v1594 = vpop.f32.mrf.mxu0
    %v1595 = vadd.f32 %v352, %v1594
    %1596 = vmatprep.mubr.bf16.mxu0 %v473
    %1597 = vmatmul.mubr.bf16.gmra.mxu0 %v472
    %v1598 = vpop.f32.mrf.mxu0
    %v1599 = vadd.f32 %v348, %v1598
    %v1600 = vpop.f32.mrf.mxu0
    %v1601 = vadd.f32 %v352, %v1600
    %v1602 = vpop.f32.mrf.mxu0
    %v1603 = vadd.f32 %v348, %v1602
    %v1604 = vpop.f32.mrf.mxu0
    %v1605 = vadd.f32 %v352, %v1604
    %1606 = vmatprep.mubr.bf16.mxu0 %v481
    %1607 = vmatmul.mubr.bf16.gmra.mxu0 %v480
    %v1608 = vpop.f32.mrf.mxu0
    %v1609 = vadd.f32 %v348, %v1608
    %v1610 = vpop.f32.mrf.mxu0
    %v1611 = vadd.f32 %v352, %v1610
    %v1612 = vpop.f32.mrf.mxu0
    %v1613 = vadd.f32 %v348, %v1612
    %v1614 = vpop.f32.mrf.mxu0
    %v1615 = vadd.f32 %v352, %v1614
    %1616 = vdwg.mxu0
    %1617 = vmatprep.subr.bf16.mxu0 %v1230
    %1618 = vmatpush1.bf16.msra.mxu0 %v1229
    %1619 = vmatprep.subr.bf16.mxu0 %v1227
    %1620 = vmatpush1.bf16.msra.mxu0 %v1226
    %1621 = vmatprep.subr.bf16.mxu0 %v1224
    %1622 = vmatpush1.bf16.msra.mxu0 %v1223
    %1623 = vmatprep.subr.bf16.mxu0 %v1221
    %1624 = vmatpush1.bf16.msra.mxu0 %v1220
    %1625 = vmatprep.subr.bf16.mxu0 %v1218
    %1626 = vmatpush1.bf16.msra.mxu0 %v1217
    %1627 = vmatprep.subr.bf16.mxu0 %v1215
    %1628 = vmatpush1.bf16.msra.mxu0 %v1214
    %1629 = vmatprep.subr.bf16.mxu0 %v1212
    %1630 = vmatpush1.bf16.msra.mxu0 %v1211
    %1631 = vmatprep.subr.bf16.mxu0 %v1209
    %1632 = vmatpush1.bf16.msra.mxu0 %v1208
    %1633 = vmatprep.subr.bf16.mxu0 %v1254
    %1634 = vmatpush2.bf16.msra.mxu0 %v1253
    %1635 = vmatprep.subr.bf16.mxu0 %v1251
    %1636 = vmatpush2.bf16.msra.mxu0 %v1250
    %1637 = vmatprep.subr.bf16.mxu0 %v1248
    %1638 = vmatpush2.bf16.msra.mxu0 %v1247
    %1639 = vmatprep.subr.bf16.mxu0 %v1245
    %1640 = vmatpush2.bf16.msra.mxu0 %v1244
    %1641 = vmatprep.subr.bf16.mxu0 %v1242
    %1642 = vmatpush2.bf16.msra.mxu0 %v1241
    %1643 = vmatprep.subr.bf16.mxu0 %v1239
    %1644 = vmatpush2.bf16.msra.mxu0 %v1238
    %1645 = vmatprep.subr.bf16.mxu0 %v1236
    %1646 = vmatpush2.bf16.msra.mxu0 %v1235
    %1647 = vmatprep.subr.bf16.mxu0 %v1233
    %1648 = vmatpush2.bf16.msra.mxu0 %v1232
    %1649 = vmatprep.mubr.bf16.mxu0 %v459
    %1650 = vmatmul.mubr.bf16.gmra.mxu0 %v458
    %v1651 = vpop.f32.mrf.mxu0
    %v1652 = vadd.f32 %v1579, %v1651
    %v1653 = vpop.f32.mrf.mxu0
    %v1654 = vadd.f32 %v1581, %v1653
    %v1655 = vpop.f32.mrf.mxu0
    %v1656 = vadd.f32 %v1583, %v1655
    %v1657 = vpop.f32.mrf.mxu0
    %v1658 = vadd.f32 %v1585, %v1657
    %1659 = vmatprep.mubr.bf16.mxu0 %v467
    %1660 = vmatmul.mubr.bf16.gmra.mxu0 %v466
    %v1661 = vpop.f32.mrf.mxu0
    %v1662 = vadd.f32 %v1589, %v1661
    %v1663 = vpop.f32.mrf.mxu0
    %v1664 = vadd.f32 %v1591, %v1663
    %v1665 = vpop.f32.mrf.mxu0
    %v1666 = vadd.f32 %v1593, %v1665
    %v1667 = vpop.f32.mrf.mxu0
    %v1668 = vadd.f32 %v1595, %v1667
    %1669 = vmatprep.mubr.bf16.mxu0 %v475
    %1670 = vmatmul.mubr.bf16.gmra.mxu0 %v474
    %v1671 = vpop.f32.mrf.mxu0
    %v1672 = vadd.f32 %v1599, %v1671
    %v1673 = vpop.f32.mrf.mxu0
    %v1674 = vadd.f32 %v1601, %v1673
    %v1675 = vpop.f32.mrf.mxu0
    %v1676 = vadd.f32 %v1603, %v1675
    %v1677 = vpop.f32.mrf.mxu0
    %v1678 = vadd.f32 %v1605, %v1677
    %1679 = vmatprep.mubr.bf16.mxu0 %v483
    %1680 = vmatmul.mubr.bf16.gmra.mxu0 %v482
    %v1681 = vpop.f32.mrf.mxu0
    %v1682 = vadd.f32 %v1609, %v1681
    %v1683 = vpop.f32.mrf.mxu0
    %v1684 = vadd.f32 %v1611, %v1683
    %v1685 = vpop.f32.mrf.mxu0
    %v1686 = vadd.f32 %v1613, %v1685
    %v1687 = vpop.f32.mrf.mxu0
    %v1688 = vadd.f32 %v1615, %v1687
    %1689 = vdwg.mxu0
    %1690 = vmatprep.subr.bf16.mxu0 %v1278
    %1691 = vmatpush1.bf16.msra.mxu0 %v1277
    %1692 = vmatprep.subr.bf16.mxu0 %v1275
    %1693 = vmatpush1.bf16.msra.mxu0 %v1274
    %1694 = vmatprep.subr.bf16.mxu0 %v1272
    %1695 = vmatpush1.bf16.msra.mxu0 %v1271
    %1696 = vmatprep.subr.bf16.mxu0 %v1269
    %1697 = vmatpush1.bf16.msra.mxu0 %v1268
    %1698 = vmatprep.subr.bf16.mxu0 %v1266
    %1699 = vmatpush1.bf16.msra.mxu0 %v1265
    %1700 = vmatprep.subr.bf16.mxu0 %v1263
    %1701 = vmatpush1.bf16.msra.mxu0 %v1262
    %1702 = vmatprep.subr.bf16.mxu0 %v1260
    %1703 = vmatpush1.bf16.msra.mxu0 %v1259
    %1704 = vmatprep.subr.bf16.mxu0 %v1257
    %1705 = vmatpush1.bf16.msra.mxu0 %v1256
    %1706 = vmatprep.subr.bf16.mxu0 %v1302
    %1707 = vmatpush2.bf16.msra.mxu0 %v1301
    %1708 = vmatprep.subr.bf16.mxu0 %v1299
    %1709 = vmatpush2.bf16.msra.mxu0 %v1298
    %1710 = vmatprep.subr.bf16.mxu0 %v1296
    %1711 = vmatpush2.bf16.msra.mxu0 %v1295
    %1712 = vmatprep.subr.bf16.mxu0 %v1293
    %1713 = vmatpush2.bf16.msra.mxu0 %v1292
    %1714 = vmatprep.subr.bf16.mxu0 %v1290
    %1715 = vmatpush2.bf16.msra.mxu0 %v1289
    %1716 = vmatprep.subr.bf16.mxu0 %v1287
    %1717 = vmatpush2.bf16.msra.mxu0 %v1286
    %1718 = vmatprep.subr.bf16.mxu0 %v1284
    %1719 = vmatpush2.bf16.msra.mxu0 %v1283
    %1720 = vmatprep.subr.bf16.mxu0 %v1281
    %1721 = vmatpush2.bf16.msra.mxu0 %v1280
    %1722 = vmatprep.mubr.bf16.mxu0 %v461
    %1723 = vmatmul.mubr.bf16.gmra.mxu0 %v460
    %v1724 = vpop.f32.mrf.mxu0
    %v1725 = vadd.f32 %v1652, %v1724
    %v1726 = vpop.f32.mrf.mxu0
    %v1727 = vadd.f32 %v1654, %v1726
    %v1728 = vpop.f32.mrf.mxu0
    %v1729 = vadd.f32 %v1656, %v1728
    %v1730 = vpop.f32.mrf.mxu0
    %v1731 = vadd.f32 %v1658, %v1730
    %1732 = vmatprep.mubr.bf16.mxu0 %v469
    %1733 = vmatmul.mubr.bf16.gmra.mxu0 %v468
    %v1734 = vpop.f32.mrf.mxu0
    %v1735 = vadd.f32 %v1662, %v1734
    %v1736 = vpop.f32.mrf.mxu0
    %v1737 = vadd.f32 %v1664, %v1736
    %v1738 = vpop.f32.mrf.mxu0
    %v1739 = vadd.f32 %v1666, %v1738
    %v1740 = vpop.f32.mrf.mxu0
    %v1741 = vadd.f32 %v1668, %v1740
    %1742 = vmatprep.mubr.bf16.mxu0 %v477
    %1743 = vmatmul.mubr.bf16.gmra.mxu0 %v476
    %v1744 = vpop.f32.mrf.mxu0
    %v1745 = vadd.f32 %v1672, %v1744
    %v1746 = vpop.f32.mrf.mxu0
    %v1747 = vadd.f32 %v1674, %v1746
    %v1748 = vpop.f32.mrf.mxu0
    %v1749 = vadd.f32 %v1676, %v1748
    %v1750 = vpop.f32.mrf.mxu0
    %v1751 = vadd.f32 %v1678, %v1750
    %1752 = vmatprep.mubr.bf16.mxu0 %v485
    %1753 = vmatmul.mubr.bf16.gmra.mxu0 %v484
    %v1754 = vpop.f32.mrf.mxu0
    %v1755 = vadd.f32 %v1682, %v1754
    %v1756 = vpop.f32.mrf.mxu0
    %v1757 = vadd.f32 %v1684, %v1756
    %v1758 = vpop.f32.mrf.mxu0
    %v1759 = vadd.f32 %v1686, %v1758
    %v1760 = vpop.f32.mrf.mxu0
    %v1761 = vadd.f32 %v1688, %v1760
    %1762 = vdwg.mxu0
    %1763 = vmatprep.subr.bf16.mxu0 %v1326
    %1764 = vmatpush1.bf16.msra.mxu0 %v1325
    %1765 = vmatprep.subr.bf16.mxu0 %v1323
    %1766 = vmatpush1.bf16.msra.mxu0 %v1322
    %1767 = vmatprep.subr.bf16.mxu0 %v1320
    %1768 = vmatpush1.bf16.msra.mxu0 %v1319
    %1769 = vmatprep.subr.bf16.mxu0 %v1317
    %1770 = vmatpush1.bf16.msra.mxu0 %v1316
    %1771 = vmatprep.subr.bf16.mxu0 %v1314
    %1772 = vmatpush1.bf16.msra.mxu0 %v1313
    %1773 = vmatprep.subr.bf16.mxu0 %v1311
    %1774 = vmatpush1.bf16.msra.mxu0 %v1310
    %1775 = vmatprep.subr.bf16.mxu0 %v1308
    %1776 = vmatpush1.bf16.msra.mxu0 %v1307
    %1777 = vmatprep.subr.bf16.mxu0 %v1305
    %1778 = vmatpush1.bf16.msra.mxu0 %v1304
    %1779 = vmatprep.subr.bf16.mxu0 %v1350
    %1780 = vmatpush2.bf16.msra.mxu0 %v1349
    %1781 = vmatprep.subr.bf16.mxu0 %v1347
    %1782 = vmatpush2.bf16.msra.mxu0 %v1346
    %1783 = vmatprep.subr.bf16.mxu0 %v1344
    %1784 = vmatpush2.bf16.msra.mxu0 %v1343
    %1785 = vmatprep.subr.bf16.mxu0 %v1341
    %1786 = vmatpush2.bf16.msra.mxu0 %v1340
    %1787 = vmatprep.subr.bf16.mxu0 %v1338
    %1788 = vmatpush2.bf16.msra.mxu0 %v1337
    %1789 = vmatprep.subr.bf16.mxu0 %v1335
    %1790 = vmatpush2.bf16.msra.mxu0 %v1334
    %1791 = vmatprep.subr.bf16.mxu0 %v1332
    %1792 = vmatpush2.bf16.msra.mxu0 %v1331
    %1793 = vmatprep.subr.bf16.mxu0 %v1329
    %1794 = vmatpush2.bf16.msra.mxu0 %v1328
    %1795 = vmatprep.mubr.bf16.mxu0 %v463
    %1796 = vmatmul.mubr.bf16.gmra.mxu0 %v462
    %v1797 = vpop.f32.mrf.mxu0
    %v1798 = vadd.f32 %v1725, %v1797
    %v1799 = vpop.f32.mrf.mxu0
    %v1800 = vadd.f32 %v1727, %v1799
    %v1801 = vpop.f32.mrf.mxu0
    %v1802 = vadd.f32 %v1729, %v1801
    %v1803 = vpop.f32.mrf.mxu0
    %v1804 = vadd.f32 %v1731, %v1803
    %1805 = vmatprep.mubr.bf16.mxu0 %v471
    %1806 = vmatmul.mubr.bf16.gmra.mxu0 %v470
    %v1807 = vpop.f32.mrf.mxu0
    %v1808 = vadd.f32 %v1735, %v1807
    %v1809 = vpop.f32.mrf.mxu0
    %v1810 = vadd.f32 %v1737, %v1809
    %v1811 = vpop.f32.mrf.mxu0
    %v1812 = vadd.f32 %v1739, %v1811
    %v1813 = vpop.f32.mrf.mxu0
    %v1814 = vadd.f32 %v1741, %v1813
    %1815 = vmatprep.mubr.bf16.mxu0 %v479
    %1816 = vmatmul.mubr.bf16.gmra.mxu0 %v478
    %v1817 = vpop.f32.mrf.mxu0
    %v1818 = vadd.f32 %v1745, %v1817
    %v1819 = vpop.f32.mrf.mxu0
    %v1820 = vadd.f32 %v1747, %v1819
    %v1821 = vpop.f32.mrf.mxu0
    %v1822 = vadd.f32 %v1749, %v1821
    %v1823 = vpop.f32.mrf.mxu0
    %v1824 = vadd.f32 %v1751, %v1823
    %1825 = vmatprep.mubr.bf16.mxu0 %v487
    %1826 = vmatmul.mubr.bf16.gmra.mxu0 %v486
    %v1827 = vpop.f32.mrf.mxu0
    %v1828 = vadd.f32 %v1755, %v1827
    %v1829 = vpop.f32.mrf.mxu0
    %v1830 = vadd.f32 %v1757, %v1829
    %v1831 = vpop.f32.mrf.mxu0
    %v1832 = vadd.f32 %v1759, %v1831
    %v1833 = vpop.f32.mrf.mxu0
    %v1834 = vadd.f32 %v1761, %v1833
    %1835 = vdwg.mxu0
    %1836 = vmatprep.subr.bf16.mxu0 0
    %1837 = vmatpush1.bf16.msra.mxu0 %v1183
    %1838 = vmatprep.subr.bf16.mxu0 0
    %1839 = vmatpush1.bf16.msra.mxu0 %v1180
    %1840 = vmatprep.subr.bf16.mxu0 0
    %1841 = vmatpush1.bf16.msra.mxu0 %v1177
    %1842 = vmatprep.subr.bf16.mxu0 0
    %1843 = vmatpush1.bf16.msra.mxu0 %v1174
    %1844 = vmatprep.subr.bf16.mxu0 0
    %1845 = vmatpush1.bf16.msra.mxu0 %v1171
    %1846 = vmatprep.subr.bf16.mxu0 0
    %1847 = vmatpush1.bf16.msra.mxu0 %v1168
    %1848 = vmatprep.subr.bf16.mxu0 0
    %1849 = vmatpush1.bf16.msra.mxu0 %v1165
    %1850 = vmatprep.subr.bf16.mxu0 0
    %1851 = vmatpush1.bf16.msra.mxu0 %v1162
    %1852 = vmatprep.subr.bf16.mxu0 0
    %1853 = vmatpush2.bf16.msra.mxu0 %v1207
    %1854 = vmatprep.subr.bf16.mxu0 0
    %1855 = vmatpush2.bf16.msra.mxu0 %v1204
    %1856 = vmatprep.subr.bf16.mxu0 0
    %1857 = vmatpush2.bf16.msra.mxu0 %v1201
    %1858 = vmatprep.subr.bf16.mxu0 0
    %1859 = vmatpush2.bf16.msra.mxu0 %v1198
    %1860 = vmatprep.subr.bf16.mxu0 0
    %1861 = vmatpush2.bf16.msra.mxu0 %v1195
    %1862 = vmatprep.subr.bf16.mxu0 0
    %1863 = vmatpush2.bf16.msra.mxu0 %v1192
    %1864 = vmatprep.subr.bf16.mxu0 0
    %1865 = vmatpush2.bf16.msra.mxu0 %v1189
    %1866 = vmatprep.subr.bf16.mxu0 0
    %1867 = vmatpush2.bf16.msra.mxu0 %v1186
    %1868 = vmatprep.mubr.bf16.mxu0 %v457
    %1869 = vmatmul.mubr.bf16.gmra.mxu0 %v456
    %v1870 = vpop.f32.mrf.mxu0
    %v1871 = vadd.f32 %v356, %v1870
    %v1872 = vpop.f32.mrf.mxu0
    %v1873 = vpop.f32.mrf.mxu0
    %v1874 = vadd.f32 %v356, %v1873
    %v1875 = vpop.f32.mrf.mxu0
    %1876 = vmatprep.mubr.bf16.mxu0 %v465
    %1877 = vmatmul.mubr.bf16.gmra.mxu0 %v464
    %v1878 = vpop.f32.mrf.mxu0
    %v1879 = vadd.f32 %v356, %v1878
    %v1880 = vpop.f32.mrf.mxu0
    %v1881 = vpop.f32.mrf.mxu0
    %v1882 = vadd.f32 %v356, %v1881
    %v1883 = vpop.f32.mrf.mxu0
    %1884 = vmatprep.mubr.bf16.mxu0 %v473
    %1885 = vmatmul.mubr.bf16.gmra.mxu0 %v472
    %v1886 = vpop.f32.mrf.mxu0
    %v1887 = vadd.f32 %v356, %v1886
    %v1888 = vpop.f32.mrf.mxu0
    %v1889 = vpop.f32.mrf.mxu0
    %v1890 = vadd.f32 %v356, %v1889
    %v1891 = vpop.f32.mrf.mxu0
    %1892 = vmatprep.mubr.bf16.mxu0 %v481
    %1893 = vmatmul.mubr.bf16.gmra.mxu0 %v480
    %v1894 = vpop.f32.mrf.mxu0
    %v1895 = vadd.f32 %v356, %v1894
    %v1896 = vpop.f32.mrf.mxu0
    %v1897 = vpop.f32.mrf.mxu0
    %v1898 = vadd.f32 %v356, %v1897
    %v1899 = vpop.f32.mrf.mxu0
    %1900 = vdwg.mxu0
    %1901 = vmatprep.subr.bf16.mxu0 0
    %1902 = vmatpush1.bf16.msra.mxu0 %v1231
    %1903 = vmatprep.subr.bf16.mxu0 0
    %1904 = vmatpush1.bf16.msra.mxu0 %v1228
    %1905 = vmatprep.subr.bf16.mxu0 0
    %1906 = vmatpush1.bf16.msra.mxu0 %v1225
    %1907 = vmatprep.subr.bf16.mxu0 0
    %1908 = vmatpush1.bf16.msra.mxu0 %v1222
    %1909 = vmatprep.subr.bf16.mxu0 0
    %1910 = vmatpush1.bf16.msra.mxu0 %v1219
    %1911 = vmatprep.subr.bf16.mxu0 0
    %1912 = vmatpush1.bf16.msra.mxu0 %v1216
    %1913 = vmatprep.subr.bf16.mxu0 0
    %1914 = vmatpush1.bf16.msra.mxu0 %v1213
    %1915 = vmatprep.subr.bf16.mxu0 0
    %1916 = vmatpush1.bf16.msra.mxu0 %v1210
    %1917 = vmatprep.subr.bf16.mxu0 0
    %1918 = vmatpush2.bf16.msra.mxu0 %v1255
    %1919 = vmatprep.subr.bf16.mxu0 0
    %1920 = vmatpush2.bf16.msra.mxu0 %v1252
    %1921 = vmatprep.subr.bf16.mxu0 0
    %1922 = vmatpush2.bf16.msra.mxu0 %v1249
    %1923 = vmatprep.subr.bf16.mxu0 0
    %1924 = vmatpush2.bf16.msra.mxu0 %v1246
    %1925 = vmatprep.subr.bf16.mxu0 0
    %1926 = vmatpush2.bf16.msra.mxu0 %v1243
    %1927 = vmatprep.subr.bf16.mxu0 0
    %1928 = vmatpush2.bf16.msra.mxu0 %v1240
    %1929 = vmatprep.subr.bf16.mxu0 0
    %1930 = vmatpush2.bf16.msra.mxu0 %v1237
    %1931 = vmatprep.subr.bf16.mxu0 0
    %1932 = vmatpush2.bf16.msra.mxu0 %v1234
    %1933 = vmatprep.mubr.bf16.mxu0 %v459
    %1934 = vmatmul.mubr.bf16.gmra.mxu0 %v458
    %v1935 = vpop.f32.mrf.mxu0
    %v1936 = vadd.f32 %v1871, %v1935
    %v1937 = vpop.f32.mrf.mxu0
    %v1938 = vpop.f32.mrf.mxu0
    %v1939 = vadd.f32 %v1874, %v1938
    %v1940 = vpop.f32.mrf.mxu0
    %1941 = vmatprep.mubr.bf16.mxu0 %v467
    %1942 = vmatmul.mubr.bf16.gmra.mxu0 %v466
    %v1943 = vpop.f32.mrf.mxu0
    %v1944 = vadd.f32 %v1879, %v1943
    %v1945 = vpop.f32.mrf.mxu0
    %v1946 = vpop.f32.mrf.mxu0
    %v1947 = vadd.f32 %v1882, %v1946
    %v1948 = vpop.f32.mrf.mxu0
    %1949 = vmatprep.mubr.bf16.mxu0 %v475
    %1950 = vmatmul.mubr.bf16.gmra.mxu0 %v474
    %v1951 = vpop.f32.mrf.mxu0
    %v1952 = vadd.f32 %v1887, %v1951
    %v1953 = vpop.f32.mrf.mxu0
    %v1954 = vpop.f32.mrf.mxu0
    %v1955 = vadd.f32 %v1890, %v1954
    %v1956 = vpop.f32.mrf.mxu0
    %1957 = vmatprep.mubr.bf16.mxu0 %v483
    %1958 = vmatmul.mubr.bf16.gmra.mxu0 %v482
    %v1959 = vpop.f32.mrf.mxu0
    %v1960 = vadd.f32 %v1895, %v1959
    %v1961 = vpop.f32.mrf.mxu0
    %v1962 = vpop.f32.mrf.mxu0
    %v1963 = vadd.f32 %v1898, %v1962
    %v1964 = vpop.f32.mrf.mxu0
    %1965 = vdwg.mxu0
    %1966 = vmatprep.subr.bf16.mxu0 0
    %1967 = vmatpush1.bf16.msra.mxu0 %v1279
    %1968 = vmatprep.subr.bf16.mxu0 0
    %1969 = vmatpush1.bf16.msra.mxu0 %v1276
    %1970 = vmatprep.subr.bf16.mxu0 0
    %1971 = vmatpush1.bf16.msra.mxu0 %v1273
    %1972 = vmatprep.subr.bf16.mxu0 0
    %1973 = vmatpush1.bf16.msra.mxu0 %v1270
    %1974 = vmatprep.subr.bf16.mxu0 0
    %1975 = vmatpush1.bf16.msra.mxu0 %v1267
    %1976 = vmatprep.subr.bf16.mxu0 0
    %1977 = vmatpush1.bf16.msra.mxu0 %v1264
    %1978 = vmatprep.subr.bf16.mxu0 0
    %1979 = vmatpush1.bf16.msra.mxu0 %v1261
    %1980 = vmatprep.subr.bf16.mxu0 0
    %1981 = vmatpush1.bf16.msra.mxu0 %v1258
    %1982 = vmatprep.subr.bf16.mxu0 0
    %1983 = vmatpush2.bf16.msra.mxu0 %v1303
    %1984 = vmatprep.subr.bf16.mxu0 0
    %1985 = vmatpush2.bf16.msra.mxu0 %v1300
    %1986 = vmatprep.subr.bf16.mxu0 0
    %1987 = vmatpush2.bf16.msra.mxu0 %v1297
    %1988 = vmatprep.subr.bf16.mxu0 0
    %1989 = vmatpush2.bf16.msra.mxu0 %v1294
    %1990 = vmatprep.subr.bf16.mxu0 0
    %1991 = vmatpush2.bf16.msra.mxu0 %v1291
    %1992 = vmatprep.subr.bf16.mxu0 0
    %1993 = vmatpush2.bf16.msra.mxu0 %v1288
    %1994 = vmatprep.subr.bf16.mxu0 0
    %1995 = vmatpush2.bf16.msra.mxu0 %v1285
    %1996 = vmatprep.subr.bf16.mxu0 0
    %1997 = vmatpush2.bf16.msra.mxu0 %v1282
    %1998 = vmatprep.mubr.bf16.mxu0 %v461
    %1999 = vmatmul.mubr.bf16.gmra.mxu0 %v460
    %v2000 = vpop.f32.mrf.mxu0
    %v2001 = vadd.f32 %v1936, %v2000
    %v2002 = vpop.f32.mrf.mxu0
    %v2003 = vpop.f32.mrf.mxu0
    %v2004 = vadd.f32 %v1939, %v2003
    %v2005 = vpop.f32.mrf.mxu0
    %2006 = vmatprep.mubr.bf16.mxu0 %v469
    %2007 = vmatmul.mubr.bf16.gmra.mxu0 %v468
    %v2008 = vpop.f32.mrf.mxu0
    %v2009 = vadd.f32 %v1944, %v2008
    %v2010 = vpop.f32.mrf.mxu0
    %v2011 = vpop.f32.mrf.mxu0
    %v2012 = vadd.f32 %v1947, %v2011
    %v2013 = vpop.f32.mrf.mxu0
    %2014 = vmatprep.mubr.bf16.mxu0 %v477
    %2015 = vmatmul.mubr.bf16.gmra.mxu0 %v476
    %v2016 = vpop.f32.mrf.mxu0
    %v2017 = vadd.f32 %v1952, %v2016
    %v2018 = vpop.f32.mrf.mxu0
    %v2019 = vpop.f32.mrf.mxu0
    %v2020 = vadd.f32 %v1955, %v2019
    %v2021 = vpop.f32.mrf.mxu0
    %2022 = vmatprep.mubr.bf16.mxu0 %v485
    %2023 = vmatmul.mubr.bf16.gmra.mxu0 %v484
    %v2024 = vpop.f32.mrf.mxu0
    %v2025 = vadd.f32 %v1960, %v2024
    %v2026 = vpop.f32.mrf.mxu0
    %v2027 = vpop.f32.mrf.mxu0
    %v2028 = vadd.f32 %v1963, %v2027
    %v2029 = vpop.f32.mrf.mxu0
    %2030 = vdwg.mxu0
    %2031 = vmatprep.subr.bf16.mxu0 0
    %2032 = vmatpush1.bf16.msra.mxu0 %v1327
    %2033 = vmatprep.subr.bf16.mxu0 0
    %2034 = vmatpush1.bf16.msra.mxu0 %v1324
    %2035 = vmatprep.subr.bf16.mxu0 0
    %2036 = vmatpush1.bf16.msra.mxu0 %v1321
    %2037 = vmatprep.subr.bf16.mxu0 0
    %2038 = vmatpush1.bf16.msra.mxu0 %v1318
    %2039 = vmatprep.subr.bf16.mxu0 0
    %2040 = vmatpush1.bf16.msra.mxu0 %v1315
    %2041 = vmatprep.subr.bf16.mxu0 0
    %2042 = vmatpush1.bf16.msra.mxu0 %v1312
    %2043 = vmatprep.subr.bf16.mxu0 0
    %2044 = vmatpush1.bf16.msra.mxu0 %v1309
    %2045 = vmatprep.subr.bf16.mxu0 0
    %2046 = vmatpush1.bf16.msra.mxu0 %v1306
    %2047 = vmatprep.subr.bf16.mxu0 0
    %2048 = vmatpush2.bf16.msra.mxu0 %v1351
    %2049 = vmatprep.subr.bf16.mxu0 0
    %2050 = vmatpush2.bf16.msra.mxu0 %v1348
    %2051 = vmatprep.subr.bf16.mxu0 0
    %2052 = vmatpush2.bf16.msra.mxu0 %v1345
    %2053 = vmatprep.subr.bf16.mxu0 0
    %2054 = vmatpush2.bf16.msra.mxu0 %v1342
    %2055 = vmatprep.subr.bf16.mxu0 0
    %2056 = vmatpush2.bf16.msra.mxu0 %v1339
    %2057 = vmatprep.subr.bf16.mxu0 0
    %2058 = vmatpush2.bf16.msra.mxu0 %v1336
    %2059 = vmatprep.subr.bf16.mxu0 0
    %2060 = vmatpush2.bf16.msra.mxu0 %v1333
    %2061 = vmatprep.subr.bf16.mxu0 0
    %2062 = vmatpush2.bf16.msra.mxu0 %v1330
    %2063 = vmatprep.mubr.bf16.mxu0 %v463
    %2064 = vmatmul.mubr.bf16.gmra.mxu0 %v462
    %v2065 = vpop.f32.mrf.mxu0
    %v2066 = vadd.f32 %v2001, %v2065
    %v2067 = vpop.f32.mrf.mxu0
    %v2068 = vpop.f32.mrf.mxu0
    %v2069 = vadd.f32 %v2004, %v2068
    %v2070 = vpop.f32.mrf.mxu0
    %2071 = vmatprep.mubr.bf16.mxu0 %v471
    %2072 = vmatmul.mubr.bf16.gmra.mxu0 %v470
    %v2073 = vpop.f32.mrf.mxu0
    %v2074 = vadd.f32 %v2009, %v2073
    %v2075 = vpop.f32.mrf.mxu0
    %v2076 = vpop.f32.mrf.mxu0
    %v2077 = vadd.f32 %v2012, %v2076
    %v2078 = vpop.f32.mrf.mxu0
    %2079 = vmatprep.mubr.bf16.mxu0 %v479
    %2080 = vmatmul.mubr.bf16.gmra.mxu0 %v478
    %v2081 = vpop.f32.mrf.mxu0
    %v2082 = vadd.f32 %v2017, %v2081
    %v2083 = vpop.f32.mrf.mxu0
    %v2084 = vpop.f32.mrf.mxu0
    %v2085 = vadd.f32 %v2020, %v2084
    %v2086 = vpop.f32.mrf.mxu0
    %2087 = vmatprep.mubr.bf16.mxu0 %v487
    %2088 = vmatmul.mubr.bf16.gmra.mxu0 %v486
    %v2089 = vpop.f32.mrf.mxu0
    %v2090 = vadd.f32 %v2025, %v2089
    %v2091 = vpop.f32.mrf.mxu0
    %v2092 = vpop.f32.mrf.mxu0
    %v2093 = vadd.f32 %v2028, %v2092
    %v2094 = vpop.f32.mrf.mxu0
    %2095 = vdwg.mxu0
    %v2096 = vmax.f32 %v1798, 0.0
    %v2097 = vmax.f32 %v1800, 0.0
    %v2098 = vmax.f32 %v2066, 0.0
    %v2099 = vmax.f32 %v1802, 0.0
    %v2100 = vmax.f32 %v1804, 0.0
    %v2101 = vmax.f32 %v2069, 0.0
    %v2102 = vmax.f32 %v1808, 0.0
    %v2103 = vmax.f32 %v1810, 0.0
    %v2104 = vmax.f32 %v2074, 0.0
    %v2105 = vmax.f32 %v1812, 0.0
    %v2106 = vmax.f32 %v1814, 0.0
    %v2107 = vmax.f32 %v2077, 0.0
    %v2108 = vmax.f32 %v1818, 0.0
    %v2109 = vmax.f32 %v1820, 0.0
    %v2110 = vmax.f32 %v2082, 0.0
    %v2111 = vmax.f32 %v1822, 0.0
    %v2112 = vmax.f32 %v1824, 0.0
    %v2113 = vmax.f32 %v2085, 0.0
    %v2114 = vmax.f32 %v1828, 0.0
    %v2115 = vmax.f32 %v1830, 0.0
    %v2116 = vmax.f32 %v2090, 0.0
    %v2117 = vmax.f32 %v1832, 0.0
    %v2118 = vmax.f32 %v1834, 0.0
    %v2119 = vmax.f32 %v2093, 0.0
    %v2120 = vpack.c.bf16 %v2099, %v2096
    %v2121 = vpack.c.bf16 %v2100, %v2097
    %v2122 = vpack.c.bf16 %v2101, %v2098
    %v2123 = vpack.c.bf16 %v2105, %v2102
    %v2124 = vpack.c.bf16 %v2106, %v2103
    %v2125 = vpack.c.bf16 %v2107, %v2104
    %v2126 = vpack.c.bf16 %v2111, %v2108
    %v2127 = vpack.c.bf16 %v2112, %v2109
    %v2128 = vpack.c.bf16 %v2113, %v2110
    %v2129 = vpack.c.bf16 %v2117, %v2114
    %v2130 = vpack.c.bf16 %v2118, %v2115
    %v2131 = vpack.c.bf16 %v2119, %v2116
    %v2132 = vld [vmem:[#allocation4] sm:$0xff]
    %v2133 = vld [vmem:[#allocation4 + $0x8] sm:$0xf]
    %v2134 = vld [vmem:[#allocation4 + $0xc] sm:$0xff]
    %v2135 = vld [vmem:[#allocation4 + $0x14] sm:$0xf]
    %v2136 = vld [vmem:[#allocation4 + $0x18] sm:$0xff]
    %v2137 = vld [vmem:[#allocation4 + $0x20] sm:$0xf]
    %v2138 = vld [vmem:[#allocation4 + $0x24] sm:$0xff]
    %v2139 = vld [vmem:[#allocation4 + $0x2c] sm:$0xf]
    %v2140 = vld [vmem:[#allocation4 + $0x30] sm:$0xff]
    %v2141 = vld [vmem:[#allocation4 + $0x38] sm:$0xf]
    %v2142 = vld [vmem:[#allocation4 + $0x3c] sm:$0xff]
    %v2143 = vld [vmem:[#allocation4 + $0x44] sm:$0xf]
    %v2144 = vld [vmem:[#allocation4 + $0x48] sm:$0xff]
    %v2145 = vld [vmem:[#allocation4 + $0x50] sm:$0xf]
    %v2146 = vld [vmem:[#allocation4 + $0x54] sm:$0xff]
    %v2147 = vld [vmem:[#allocation4 + $0x5c] sm:$0xf]
    %v2148 = vld [vmem:[#allocation4 + $0x60] sm:$0xff]
    %v2149 = vld [vmem:[#allocation4 + $0x68] sm:$0xf]
    %v2150 = vld [vmem:[#allocation4 + $0x6c] sm:$0xff]
    %v2151 = vld [vmem:[#allocation4 + $0x74] sm:$0xf]
    %v2152 = vld [vmem:[#allocation4 + $0x78] sm:$0xff]
    %v2153 = vld [vmem:[#allocation4 + $0x80] sm:$0xf]
    %v2154 = vld [vmem:[#allocation4 + $0x84] sm:$0xff]
    %v2155 = vld [vmem:[#allocation4 + $0x8c] sm:$0xf]
    %v2156 = vld [vmem:[#allocation4 + $0x90] sm:$0xff]
    %v2157 = vld [vmem:[#allocation4 + $0x98] sm:$0xf]
    %v2158 = vld [vmem:[#allocation4 + $0x9c] sm:$0xff]
    %v2159 = vld [vmem:[#allocation4 + $0xa4] sm:$0xf]
    %v2160 = vld [vmem:[#allocation4 + $0xa8] sm:$0xff]
    %v2161 = vld [vmem:[#allocation4 + $0xb0] sm:$0xf]
    %v2162 = vld [vmem:[#allocation4 + $0xb4] sm:$0xff]
    %v2163 = vld [vmem:[#allocation4 + $0xbc] sm:$0xf]
    %v2164 = vld [vmem:[#allocation4 + $0xc0] sm:$0xff]
    %v2165 = vld [vmem:[#allocation4 + $0xc8] sm:$0xf]
    %v2166 = vld [vmem:[#allocation4 + $0xcc] sm:$0xff]
    %v2167 = vld [vmem:[#allocation4 + $0xd4] sm:$0xf]
    %v2168 = vld [vmem:[#allocation4 + $0xd8] sm:$0xff]
    %v2169 = vld [vmem:[#allocation4 + $0xe0] sm:$0xf]
    %v2170 = vld [vmem:[#allocation4 + $0xe4] sm:$0xff]
    %v2171 = vld [vmem:[#allocation4 + $0xec] sm:$0xf]
    %v2172 = vld [vmem:[#allocation4 + $0xf0] sm:$0xff]
    %v2173 = vld [vmem:[#allocation4 + $0xf8] sm:$0xf]
    %v2174 = vld [vmem:[#allocation4 + $0xfc] sm:$0xff]
    %v2175 = vld [vmem:[#allocation4 + $0x104] sm:$0xf]
    %v2176 = vld [vmem:[#allocation4 + $0x108] sm:$0xff]
    %v2177 = vld [vmem:[#allocation4 + $0x110] sm:$0xf]
    %v2178 = vld [vmem:[#allocation4 + $0x114] sm:$0xff]
    %v2179 = vld [vmem:[#allocation4 + $0x11c] sm:$0xf]
    %v2180 = vld [vmem:[#allocation4 + $0x120] sm:$0xff]
    %v2181 = vld [vmem:[#allocation4 + $0x128] sm:$0xf]
    %v2182 = vld [vmem:[#allocation4 + $0x12c] sm:$0xff]
    %v2183 = vld [vmem:[#allocation4 + $0x134] sm:$0xf]
    %v2184 = vld [vmem:[#allocation4 + $0x138] sm:$0xff]
    %v2185 = vld [vmem:[#allocation4 + $0x140] sm:$0xf]
    %v2186 = vld [vmem:[#allocation4 + $0x144] sm:$0xff]
    %v2187 = vld [vmem:[#allocation4 + $0x14c] sm:$0xf]
    %v2188 = vld [vmem:[#allocation4 + $0x150] sm:$0xff]
    %v2189 = vld [vmem:[#allocation4 + $0x158] sm:$0xf]
    %v2190 = vld [vmem:[#allocation4 + $0x15c] sm:$0xff]
    %v2191 = vld [vmem:[#allocation4 + $0x164] sm:$0xf]
    %v2192 = vld [vmem:[#allocation4 + $0x168] sm:$0xff]
    %v2193 = vld [vmem:[#allocation4 + $0x170] sm:$0xf]
    %v2194 = vld [vmem:[#allocation4 + $0x174] sm:$0xff]
    %v2195 = vld [vmem:[#allocation4 + $0x17c] sm:$0xf]
    %v2196 = vld [vmem:[#allocation4 + $0x180] sm:$0xff]
    %v2197 = vld [vmem:[#allocation4 + $0x188] sm:$0xf]
    %v2198 = vld [vmem:[#allocation4 + $0x18c] sm:$0xff]
    %v2199 = vld [vmem:[#allocation4 + $0x194] sm:$0xf]
    %v2200 = vld [vmem:[#allocation4 + $0x198] sm:$0xff]
    %v2201 = vld [vmem:[#allocation4 + $0x1a0] sm:$0xf]
    %v2202 = vld [vmem:[#allocation4 + $0x1a4] sm:$0xff]
    %v2203 = vld [vmem:[#allocation4 + $0x1ac] sm:$0xf]
    %v2204 = vld [vmem:[#allocation4 + $0x1b0] sm:$0xff]
    %v2205 = vld [vmem:[#allocation4 + $0x1b8] sm:$0xf]
    %v2206 = vld [vmem:[#allocation4 + $0x1bc] sm:$0xff]
    %v2207 = vld [vmem:[#allocation4 + $0x1c4] sm:$0xf]
    %v2208 = vld [vmem:[#allocation4 + $0x1c8] sm:$0xff]
    %v2209 = vld [vmem:[#allocation4 + $0x1d0] sm:$0xf]
    %v2210 = vld [vmem:[#allocation4 + $0x1d4] sm:$0xff]
    %v2211 = vld [vmem:[#allocation4 + $0x1dc] sm:$0xf]
    %v2212 = vld [vmem:[#allocation4 + $0x1e0] sm:$0xff]
    %v2213 = vld [vmem:[#allocation4 + $0x1e8] sm:$0xf]
    %v2214 = vld [vmem:[#allocation4 + $0x1ec] sm:$0xff]
    %v2215 = vld [vmem:[#allocation4 + $0x1f4] sm:$0xf]
    %v2216 = vld [vmem:[#allocation4 + $0x1f8] sm:$0xff]
    %v2217 = vld [vmem:[#allocation4 + $0x200] sm:$0xf]
    %v2218 = vld [vmem:[#allocation4 + $0x204] sm:$0xff]
    %v2219 = vld [vmem:[#allocation4 + $0x20c] sm:$0xf]
    %v2220 = vld [vmem:[#allocation4 + $0x210] sm:$0xff]
    %v2221 = vld [vmem:[#allocation4 + $0x218] sm:$0xf]
    %v2222 = vld [vmem:[#allocation4 + $0x21c] sm:$0xff]
    %v2223 = vld [vmem:[#allocation4 + $0x224] sm:$0xf]
    %v2224 = vld [vmem:[#allocation4 + $0x228] sm:$0xff]
    %v2225 = vld [vmem:[#allocation4 + $0x230] sm:$0xf]
    %v2226 = vld [vmem:[#allocation4 + $0x234] sm:$0xff]
    %v2227 = vld [vmem:[#allocation4 + $0x23c] sm:$0xf]
    %v2324 = vunpack.c.l.b16 %v2132
    %v2325 = vunpack.c.h.b16 %v2132
    %v2326 = vunpack.c.l.b16 %v2133
    %v2327 = vunpack.c.l.b16 %v2134
    %v2328 = vunpack.c.h.b16 %v2134
    %v2329 = vunpack.c.l.b16 %v2135
    %v2330 = vunpack.c.l.b16 %v2136
    %v2331 = vunpack.c.h.b16 %v2136
    %v2332 = vunpack.c.l.b16 %v2137
    %v2333 = vunpack.c.l.b16 %v2138
    %v2334 = vunpack.c.h.b16 %v2138
    %v2335 = vunpack.c.l.b16 %v2139
    %v2336 = vunpack.c.l.b16 %v2140
    %v2337 = vunpack.c.h.b16 %v2140
    %v2338 = vunpack.c.l.b16 %v2141
    %v2339 = vunpack.c.l.b16 %v2142
    %v2340 = vunpack.c.h.b16 %v2142
    %v2341 = vunpack.c.l.b16 %v2143
    %v2342 = vunpack.c.l.b16 %v2144
    %v2343 = vunpack.c.h.b16 %v2144
    %v2344 = vunpack.c.l.b16 %v2145
    %v2345 = vunpack.c.l.b16 %v2146
    %v2346 = vunpack.c.h.b16 %v2146
    %v2347 = vunpack.c.l.b16 %v2147
    %v2348 = vunpack.c.l.b16 %v2148
    %v2349 = vunpack.c.h.b16 %v2148
    %v2350 = vunpack.c.l.b16 %v2149
    %v2351 = vunpack.c.l.b16 %v2150
    %v2352 = vunpack.c.h.b16 %v2150
    %v2353 = vunpack.c.l.b16 %v2151
    %v2354 = vunpack.c.l.b16 %v2152
    %v2355 = vunpack.c.h.b16 %v2152
    %v2356 = vunpack.c.l.b16 %v2153
    %v2357 = vunpack.c.l.b16 %v2154
    %v2358 = vunpack.c.h.b16 %v2154
    %v2359 = vunpack.c.l.b16 %v2155
    %v2360 = vunpack.c.l.b16 %v2156
    %v2361 = vunpack.c.h.b16 %v2156
    %v2362 = vunpack.c.l.b16 %v2157
    %v2363 = vunpack.c.l.b16 %v2158
    %v2364 = vunpack.c.h.b16 %v2158
    %v2365 = vunpack.c.l.b16 %v2159
    %v2366 = vunpack.c.l.b16 %v2160
    %v2367 = vunpack.c.h.b16 %v2160
    %v2368 = vunpack.c.l.b16 %v2161
    %v2369 = vunpack.c.l.b16 %v2162
    %v2370 = vunpack.c.h.b16 %v2162
    %v2371 = vunpack.c.l.b16 %v2163
    %v2372 = vunpack.c.l.b16 %v2164
    %v2373 = vunpack.c.h.b16 %v2164
    %v2374 = vunpack.c.l.b16 %v2165
    %v2375 = vunpack.c.l.b16 %v2166
    %v2376 = vunpack.c.h.b16 %v2166
    %v2377 = vunpack.c.l.b16 %v2167
    %v2378 = vunpack.c.l.b16 %v2168
    %v2379 = vunpack.c.h.b16 %v2168
    %v2380 = vunpack.c.l.b16 %v2169
    %v2381 = vunpack.c.l.b16 %v2170
    %v2382 = vunpack.c.h.b16 %v2170
    %v2383 = vunpack.c.l.b16 %v2171
    %v2384 = vunpack.c.l.b16 %v2172
    %v2385 = vunpack.c.h.b16 %v2172
    %v2386 = vunpack.c.l.b16 %v2173
    %v2387 = vunpack.c.l.b16 %v2174
    %v2388 = vunpack.c.h.b16 %v2174
    %v2389 = vunpack.c.l.b16 %v2175
    %v2390 = vunpack.c.l.b16 %v2176
    %v2391 = vunpack.c.h.b16 %v2176
    %v2392 = vunpack.c.l.b16 %v2177
    %v2393 = vunpack.c.l.b16 %v2178
    %v2394 = vunpack.c.h.b16 %v2178
    %v2395 = vunpack.c.l.b16 %v2179
    %v2396 = vunpack.c.l.b16 %v2180
    %v2397 = vunpack.c.h.b16 %v2180
    %v2398 = vunpack.c.l.b16 %v2181
    %v2399 = vunpack.c.l.b16 %v2182
    %v2400 = vunpack.c.h.b16 %v2182
    %v2401 = vunpack.c.l.b16 %v2183
    %v2402 = vunpack.c.l.b16 %v2184
    %v2403 = vunpack.c.h.b16 %v2184
    %v2404 = vunpack.c.l.b16 %v2185
    %v2405 = vunpack.c.l.b16 %v2186
    %v2406 = vunpack.c.h.b16 %v2186
    %v2407 = vunpack.c.l.b16 %v2187
    %v2408 = vunpack.c.l.b16 %v2188
    %v2409 = vunpack.c.h.b16 %v2188
    %v2410 = vunpack.c.l.b16 %v2189
    %v2411 = vunpack.c.l.b16 %v2190
    %v2412 = vunpack.c.h.b16 %v2190
    %v2413 = vunpack.c.l.b16 %v2191
    %v2414 = vunpack.c.l.b16 %v2192
    %v2415 = vunpack.c.h.b16 %v2192
    %v2416 = vunpack.c.l.b16 %v2193
    %v2417 = vunpack.c.l.b16 %v2194
    %v2418 = vunpack.c.h.b16 %v2194
    %v2419 = vunpack.c.l.b16 %v2195
    %v2420 = vunpack.c.l.b16 %v2196
    %v2421 = vunpack.c.h.b16 %v2196
    %v2422 = vunpack.c.l.b16 %v2197
    %v2423 = vunpack.c.l.b16 %v2198
    %v2424 = vunpack.c.h.b16 %v2198
    %v2425 = vunpack.c.l.b16 %v2199
    %v2426 = vunpack.c.l.b16 %v2200
    %v2427 = vunpack.c.h.b16 %v2200
    %v2428 = vunpack.c.l.b16 %v2201
    %v2429 = vunpack.c.l.b16 %v2202
    %v2430 = vunpack.c.h.b16 %v2202
    %v2431 = vunpack.c.l.b16 %v2203
    %v2432 = vunpack.c.l.b16 %v2204
    %v2433 = vunpack.c.h.b16 %v2204
    %v2434 = vunpack.c.l.b16 %v2205
    %v2435 = vunpack.c.l.b16 %v2206
    %v2436 = vunpack.c.h.b16 %v2206
    %v2437 = vunpack.c.l.b16 %v2207
    %v2438 = vunpack.c.l.b16 %v2208
    %v2439 = vunpack.c.h.b16 %v2208
    %v2440 = vunpack.c.l.b16 %v2209
    %v2441 = vunpack.c.l.b16 %v2210
    %v2442 = vunpack.c.h.b16 %v2210
    %v2443 = vunpack.c.l.b16 %v2211
    %v2444 = vunpack.c.l.b16 %v2212
    %v2445 = vunpack.c.h.b16 %v2212
    %v2446 = vunpack.c.l.b16 %v2213
    %v2447 = vunpack.c.l.b16 %v2214
    %v2448 = vunpack.c.h.b16 %v2214
    %v2449 = vunpack.c.l.b16 %v2215
    %v2450 = vunpack.c.l.b16 %v2216
    %v2451 = vunpack.c.h.b16 %v2216
    %v2452 = vunpack.c.l.b16 %v2217
    %v2453 = vunpack.c.l.b16 %v2218
    %v2454 = vunpack.c.h.b16 %v2218
    %v2455 = vunpack.c.l.b16 %v2219
    %v2456 = vunpack.c.l.b16 %v2220
    %v2457 = vunpack.c.h.b16 %v2220
    %v2458 = vunpack.c.l.b16 %v2221
    %v2459 = vunpack.c.l.b16 %v2222
    %v2460 = vunpack.c.h.b16 %v2222
    %v2461 = vunpack.c.l.b16 %v2223
    %v2462 = vunpack.c.l.b16 %v2224
    %v2463 = vunpack.c.h.b16 %v2224
    %v2464 = vunpack.c.l.b16 %v2225
    %v2465 = vunpack.c.l.b16 %v2226
    %v2466 = vunpack.c.h.b16 %v2226
    %v2467 = vunpack.c.l.b16 %v2227
    %v2468 = vpack.c.b16 %v2327, %v2324
    %v2469 = vpack.c.b16 %v2328, %v2325
    %v2470 = vpack.c.b16 %v2329, %v2326
    %v2471 = vpack.c.b16 %v2333, %v2330
    %v2472 = vpack.c.b16 %v2334, %v2331
    %v2473 = vpack.c.b16 %v2335, %v2332
    %v2474 = vpack.c.b16 %v2339, %v2336
    %v2475 = vpack.c.b16 %v2340, %v2337
    %v2476 = vpack.c.b16 %v2341, %v2338
    %v2477 = vpack.c.b16 %v2345, %v2342
    %v2478 = vpack.c.b16 %v2346, %v2343
    %v2479 = vpack.c.b16 %v2347, %v2344
    %v2480 = vpack.c.b16 %v2351, %v2348
    %v2481 = vpack.c.b16 %v2352, %v2349
    %v2482 = vpack.c.b16 %v2353, %v2350
    %v2483 = vpack.c.b16 %v2357, %v2354
    %v2484 = vpack.c.b16 %v2358, %v2355
    %v2485 = vpack.c.b16 %v2359, %v2356
    %v2486 = vpack.c.b16 %v2363, %v2360
    %v2487 = vpack.c.b16 %v2364, %v2361
    %v2488 = vpack.c.b16 %v2365, %v2362
    %v2489 = vpack.c.b16 %v2369, %v2366
    %v2490 = vpack.c.b16 %v2370, %v2367
    %v2491 = vpack.c.b16 %v2371, %v2368
    %v2492 = vpack.c.b16 %v2375, %v2372
    %v2493 = vpack.c.b16 %v2376, %v2373
    %v2494 = vpack.c.b16 %v2377, %v2374
    %v2495 = vpack.c.b16 %v2381, %v2378
    %v2496 = vpack.c.b16 %v2382, %v2379
    %v2497 = vpack.c.b16 %v2383, %v2380
    %v2498 = vpack.c.b16 %v2387, %v2384
    %v2499 = vpack.c.b16 %v2388, %v2385
    %v2500 = vpack.c.b16 %v2389, %v2386
    %v2501 = vpack.c.b16 %v2393, %v2390
    %v2502 = vpack.c.b16 %v2394, %v2391
    %v2503 = vpack.c.b16 %v2395, %v2392
    %v2504 = vpack.c.b16 %v2399, %v2396
    %v2505 = vpack.c.b16 %v2400, %v2397
    %v2506 = vpack.c.b16 %v2401, %v2398
    %v2507 = vpack.c.b16 %v2405, %v2402
    %v2508 = vpack.c.b16 %v2406, %v2403
    %v2509 = vpack.c.b16 %v2407, %v2404
    %v2510 = vpack.c.b16 %v2411, %v2408
    %v2511 = vpack.c.b16 %v2412, %v2409
    %v2512 = vpack.c.b16 %v2413, %v2410
    %v2513 = vpack.c.b16 %v2417, %v2414
    %v2514 = vpack.c.b16 %v2418, %v2415
    %v2515 = vpack.c.b16 %v2419, %v2416
    %v2516 = vpack.c.b16 %v2423, %v2420
    %v2517 = vpack.c.b16 %v2424, %v2421
    %v2518 = vpack.c.b16 %v2425, %v2422
    %v2519 = vpack.c.b16 %v2429, %v2426
    %v2520 = vpack.c.b16 %v2430, %v2427
    %v2521 = vpack.c.b16 %v2431, %v2428
    %v2522 = vpack.c.b16 %v2435, %v2432
    %v2523 = vpack.c.b16 %v2436, %v2433
    %v2524 = vpack.c.b16 %v2437, %v2434
    %v2525 = vpack.c.b16 %v2441, %v2438
    %v2526 = vpack.c.b16 %v2442, %v2439
    %v2527 = vpack.c.b16 %v2443, %v2440
    %v2528 = vpack.c.b16 %v2447, %v2444
    %v2529 = vpack.c.b16 %v2448, %v2445
    %v2530 = vpack.c.b16 %v2449, %v2446
    %v2531 = vpack.c.b16 %v2453, %v2450
    %v2532 = vpack.c.b16 %v2454, %v2451
    %v2533 = vpack.c.b16 %v2455, %v2452
    %v2534 = vpack.c.b16 %v2459, %v2456
    %v2535 = vpack.c.b16 %v2460, %v2457
    %v2536 = vpack.c.b16 %v2461, %v2458
    %v2537 = vpack.c.b16 %v2465, %v2462
    %v2538 = vpack.c.b16 %v2466, %v2463
    %v2539 = vpack.c.b16 %v2467, %v2464
    %2612 = vmatprep.subr.bf16.mxu0 %v2490
    %2613 = vmatpush1.bf16.msra.mxu0 %v2489
    %2614 = vmatprep.subr.bf16.mxu0 %v2487
    %2615 = vmatpush1.bf16.msra.mxu0 %v2486
    %2616 = vmatprep.subr.bf16.mxu0 %v2484
    %2617 = vmatpush1.bf16.msra.mxu0 %v2483
    %2618 = vmatprep.subr.bf16.mxu0 %v2481
    %2619 = vmatpush1.bf16.msra.mxu0 %v2480
    %2620 = vmatprep.subr.bf16.mxu0 %v2478
    %2621 = vmatpush1.bf16.msra.mxu0 %v2477
    %2622 = vmatprep.subr.bf16.mxu0 %v2475
    %2623 = vmatpush1.bf16.msra.mxu0 %v2474
    %2624 = vmatprep.subr.bf16.mxu0 %v2472
    %2625 = vmatpush1.bf16.msra.mxu0 %v2471
    %2626 = vmatprep.subr.bf16.mxu0 %v2469
    %2627 = vmatpush1.bf16.msra.mxu0 %v2468
    %2628 = vmatprep.subr.bf16.mxu0 %v2514
    %2629 = vmatpush2.bf16.msra.mxu0 %v2513
    %2630 = vmatprep.subr.bf16.mxu0 %v2511
    %2631 = vmatpush2.bf16.msra.mxu0 %v2510
    %2632 = vmatprep.subr.bf16.mxu0 %v2508
    %2633 = vmatpush2.bf16.msra.mxu0 %v2507
    %2634 = vmatprep.subr.bf16.mxu0 %v2505
    %2635 = vmatpush2.bf16.msra.mxu0 %v2504
    %2636 = vmatprep.subr.bf16.mxu0 %v2502
    %2637 = vmatpush2.bf16.msra.mxu0 %v2501
    %2638 = vmatprep.subr.bf16.mxu0 %v2499
    %2639 = vmatpush2.bf16.msra.mxu0 %v2498
    %2640 = vmatprep.subr.bf16.mxu0 %v2496
    %2641 = vmatpush2.bf16.msra.mxu0 %v2495
    %2642 = vmatprep.subr.bf16.mxu0 %v2493
    %2643 = vmatpush2.bf16.msra.mxu0 %v2492
    %2644 = vmatprep.mubr.bf16.mxu0 %v2121
    %2645 = vmatmul.mubr.bf16.gmra.mxu0 %v2120
    %v2646 = vpop.f32.mrf.mxu0
    %v2647 = vadd.f32 0.0, %v2646
    %v2648 = vpop.f32.mrf.mxu0
    %v2649 = vadd.f32 0.0, %v2648
    %v2650 = vpop.f32.mrf.mxu0
    %v2651 = vadd.f32 0.0, %v2650
    %v2652 = vpop.f32.mrf.mxu0
    %v2653 = vadd.f32 0.0, %v2652
    %2654 = vmatprep.mubr.bf16.mxu0 %v2124
    %2655 = vmatmul.mubr.bf16.gmra.mxu0 %v2123
    %v2656 = vpop.f32.mrf.mxu0
    %v2657 = vadd.f32 0.0, %v2656
    %v2658 = vpop.f32.mrf.mxu0
    %v2659 = vadd.f32 0.0, %v2658
    %v2660 = vpop.f32.mrf.mxu0
    %v2661 = vadd.f32 0.0, %v2660
    %v2662 = vpop.f32.mrf.mxu0
    %v2663 = vadd.f32 0.0, %v2662
    %2664 = vmatprep.mubr.bf16.mxu0 %v2127
    %2665 = vmatmul.mubr.bf16.gmra.mxu0 %v2126
    %v2666 = vpop.f32.mrf.mxu0
    %v2667 = vadd.f32 0.0, %v2666
    %v2668 = vpop.f32.mrf.mxu0
    %v2669 = vadd.f32 0.0, %v2668
    %v2670 = vpop.f32.mrf.mxu0
    %v2671 = vadd.f32 0.0, %v2670
    %v2672 = vpop.f32.mrf.mxu0
    %v2673 = vadd.f32 0.0, %v2672
    %2674 = vmatprep.mubr.bf16.mxu0 %v2130
    %2675 = vmatmul.mubr.bf16.gmra.mxu0 %v2129
    %v2676 = vpop.f32.mrf.mxu0
    %v2677 = vadd.f32 0.0, %v2676
    %v2678 = vpop.f32.mrf.mxu0
    %v2679 = vadd.f32 0.0, %v2678
    %v2680 = vpop.f32.mrf.mxu0
    %v2681 = vadd.f32 0.0, %v2680
    %v2682 = vpop.f32.mrf.mxu0
    %v2683 = vadd.f32 0.0, %v2682
    %2684 = vdwg.mxu0
    %2685 = vmatprep.subr.bf16.mxu0 %v2538
    %2686 = vmatpush1.bf16.msra.mxu0 %v2537
    %2687 = vmatprep.subr.bf16.mxu0 %v2535
    %2688 = vmatpush1.bf16.msra.mxu0 %v2534
    %2689 = vmatprep.subr.bf16.mxu0 %v2532
    %2690 = vmatpush1.bf16.msra.mxu0 %v2531
    %2691 = vmatprep.subr.bf16.mxu0 %v2529
    %2692 = vmatpush1.bf16.msra.mxu0 %v2528
    %2693 = vmatprep.subr.bf16.mxu0 %v2526
    %2694 = vmatpush1.bf16.msra.mxu0 %v2525
    %2695 = vmatprep.subr.bf16.mxu0 %v2523
    %2696 = vmatpush1.bf16.msra.mxu0 %v2522
    %2697 = vmatprep.subr.bf16.mxu0 %v2520
    %2698 = vmatpush1.bf16.msra.mxu0 %v2519
    %2699 = vmatprep.subr.bf16.mxu0 %v2517
    %2700 = vmatpush1.bf16.msra.mxu0 %v2516
    %2701 = vmatprep.subr.bf16.mxu0 0
    %2702 = vmatpush2.bf16.msra.mxu0 0
    %2703 = vmatprep.subr.bf16.mxu0 0
    %2704 = vmatpush2.bf16.msra.mxu0 0
    %2705 = vmatprep.subr.bf16.mxu0 0
    %2706 = vmatpush2.bf16.msra.mxu0 0
    %2707 = vmatprep.subr.bf16.mxu0 0
    %2708 = vmatpush2.bf16.msra.mxu0 0
    %2709 = vmatprep.subr.bf16.mxu0 0
    %2710 = vmatpush2.bf16.msra.mxu0 0
    %2711 = vmatprep.subr.bf16.mxu0 0
    %2712 = vmatpush2.bf16.msra.mxu0 0
    %2713 = vmatprep.subr.bf16.mxu0 0
    %2714 = vmatpush2.bf16.msra.mxu0 0
    %2715 = vmatprep.subr.bf16.mxu0 0
    %2716 = vmatpush2.bf16.msra.mxu0 0
    %2717 = vmatprep.mubr.bf16.mxu0 0
    %2718 = vmatmul.mubr.bf16.gmra.mxu0 %v2122
    %v2719 = vpop.f32.mrf.mxu0
    %v2720 = vadd.f32 %v2647, %v2719
    %v2721 = vpop.f32.mrf.mxu0
    %v2722 = vadd.f32 %v2649, %v2721
    %v2723 = vpop.f32.mrf.mxu0
    %v2724 = vadd.f32 %v2651, %v2723
    %v2725 = vpop.f32.mrf.mxu0
    %v2726 = vadd.f32 %v2653, %v2725
    %2727 = vmatprep.mubr.bf16.mxu0 0
    %2728 = vmatmul.mubr.bf16.gmra.mxu0 %v2125
    %v2729 = vpop.f32.mrf.mxu0
    %v2730 = vadd.f32 %v2657, %v2729
    %v2731 = vpop.f32.mrf.mxu0
    %v2732 = vadd.f32 %v2659, %v2731
    %v2733 = vpop.f32.mrf.mxu0
    %v2734 = vadd.f32 %v2661, %v2733
    %v2735 = vpop.f32.mrf.mxu0
    %v2736 = vadd.f32 %v2663, %v2735
    %2737 = vmatprep.mubr.bf16.mxu0 0
    %2738 = vmatmul.mubr.bf16.gmra.mxu0 %v2128
    %v2739 = vpop.f32.mrf.mxu0
    %v2740 = vadd.f32 %v2667, %v2739
    %v2741 = vpop.f32.mrf.mxu0
    %v2742 = vadd.f32 %v2669, %v2741
    %v2743 = vpop.f32.mrf.mxu0
    %v2744 = vadd.f32 %v2671, %v2743
    %v2745 = vpop.f32.mrf.mxu0
    %v2746 = vadd.f32 %v2673, %v2745
    %2747 = vmatprep.mubr.bf16.mxu0 0
    %2748 = vmatmul.mubr.bf16.gmra.mxu0 %v2131
    %v2749 = vpop.f32.mrf.mxu0
    %v2750 = vadd.f32 %v2677, %v2749
    %v2751 = vpop.f32.mrf.mxu0
    %v2752 = vadd.f32 %v2679, %v2751
    %v2753 = vpop.f32.mrf.mxu0
    %v2754 = vadd.f32 %v2681, %v2753
    %v2755 = vpop.f32.mrf.mxu0
    %v2756 = vadd.f32 %v2683, %v2755
    %2757 = vdwg.mxu0
    %2758 = vmatprep.subr.bf16.mxu0 0
    %2759 = vmatpush1.bf16.msra.mxu0 %v2491
    %2760 = vmatprep.subr.bf16.mxu0 0
    %2761 = vmatpush1.bf16.msra.mxu0 %v2488
    %2762 = vmatprep.subr.bf16.mxu0 0
    %2763 = vmatpush1.bf16.msra.mxu0 %v2485
    %2764 = vmatprep.subr.bf16.mxu0 0
    %2765 = vmatpush1.bf16.msra.mxu0 %v2482
    %2766 = vmatprep.subr.bf16.mxu0 0
    %2767 = vmatpush1.bf16.msra.mxu0 %v2479
    %2768 = vmatprep.subr.bf16.mxu0 0
    %2769 = vmatpush1.bf16.msra.mxu0 %v2476
    %2770 = vmatprep.subr.bf16.mxu0 0
    %2771 = vmatpush1.bf16.msra.mxu0 %v2473
    %2772 = vmatprep.subr.bf16.mxu0 0
    %2773 = vmatpush1.bf16.msra.mxu0 %v2470
    %2774 = vmatprep.subr.bf16.mxu0 0
    %2775 = vmatpush2.bf16.msra.mxu0 %v2515
    %2776 = vmatprep.subr.bf16.mxu0 0
    %2777 = vmatpush2.bf16.msra.mxu0 %v2512
    %2778 = vmatprep.subr.bf16.mxu0 0
    %2779 = vmatpush2.bf16.msra.mxu0 %v2509
    %2780 = vmatprep.subr.bf16.mxu0 0
    %2781 = vmatpush2.bf16.msra.mxu0 %v2506
    %2782 = vmatprep.subr.bf16.mxu0 0
    %2783 = vmatpush2.bf16.msra.mxu0 %v2503
    %2784 = vmatprep.subr.bf16.mxu0 0
    %2785 = vmatpush2.bf16.msra.mxu0 %v2500
    %2786 = vmatprep.subr.bf16.mxu0 0
    %2787 = vmatpush2.bf16.msra.mxu0 %v2497
    %2788 = vmatprep.subr.bf16.mxu0 0
    %2789 = vmatpush2.bf16.msra.mxu0 %v2494
    %2790 = vmatprep.mubr.bf16.mxu0 %v2121
    %2791 = vmatmul.mubr.bf16.gmra.mxu0 %v2120
    %v2792 = vpop.f32.mrf.mxu0
    %v2793 = vadd.f32 0.0, %v2792
    %v2794 = vpop.f32.mrf.mxu0
    %v2795 = vpop.f32.mrf.mxu0
    %v2796 = vadd.f32 0.0, %v2795
    %v2797 = vpop.f32.mrf.mxu0
    %2798 = vmatprep.mubr.bf16.mxu0 %v2124
    %2799 = vmatmul.mubr.bf16.gmra.mxu0 %v2123
    %v2800 = vpop.f32.mrf.mxu0
    %v2801 = vadd.f32 0.0, %v2800
    %v2802 = vpop.f32.mrf.mxu0
    %v2803 = vpop.f32.mrf.mxu0
    %v2804 = vadd.f32 0.0, %v2803
    %v2805 = vpop.f32.mrf.mxu0
    %2806 = vmatprep.mubr.bf16.mxu0 %v2127
    %2807 = vmatmul.mubr.bf16.gmra.mxu0 %v2126
    %v2808 = vpop.f32.mrf.mxu0
    %v2809 = vadd.f32 0.0, %v2808
    %v2810 = vpop.f32.mrf.mxu0
    %v2811 = vpop.f32.mrf.mxu0
    %v2812 = vadd.f32 0.0, %v2811
    %v2813 = vpop.f32.mrf.mxu0
    %2814 = vmatprep.mubr.bf16.mxu0 %v2130
    %2815 = vmatmul.mubr.bf16.gmra.mxu0 %v2129
    %v2816 = vpop.f32.mrf.mxu0
    %v2817 = vadd.f32 0.0, %v2816
    %v2818 = vpop.f32.mrf.mxu0
    %v2819 = vpop.f32.mrf.mxu0
    %v2820 = vadd.f32 0.0, %v2819
    %v2821 = vpop.f32.mrf.mxu0
    %2822 = vdwg.mxu0
    %2823 = vmatprep.subr.bf16.mxu0 0
    %2824 = vmatpush1.bf16.msra.mxu0 %v2539
    %2825 = vmatprep.subr.bf16.mxu0 0
    %2826 = vmatpush1.bf16.msra.mxu0 %v2536
    %2827 = vmatprep.subr.bf16.mxu0 0
    %2828 = vmatpush1.bf16.msra.mxu0 %v2533
    %2829 = vmatprep.subr.bf16.mxu0 0
    %2830 = vmatpush1.bf16.msra.mxu0 %v2530
    %2831 = vmatprep.subr.bf16.mxu0 0
    %2832 = vmatpush1.bf16.msra.mxu0 %v2527
    %2833 = vmatprep.subr.bf16.mxu0 0
    %2834 = vmatpush1.bf16.msra.mxu0 %v2524
    %2835 = vmatprep.subr.bf16.mxu0 0
    %2836 = vmatpush1.bf16.msra.mxu0 %v2521
    %2837 = vmatprep.subr.bf16.mxu0 0
    %2838 = vmatpush1.bf16.msra.mxu0 %v2518
    %2839 = vmatprep.subr.bf16.mxu0 0
    %2840 = vmatpush2.bf16.msra.mxu0 0
    %2841 = vmatprep.subr.bf16.mxu0 0
    %2842 = vmatpush2.bf16.msra.mxu0 0
    %2843 = vmatprep.subr.bf16.mxu0 0
    %2844 = vmatpush2.bf16.msra.mxu0 0
    %2845 = vmatprep.subr.bf16.mxu0 0
    %2846 = vmatpush2.bf16.msra.mxu0 0
    %2847 = vmatprep.subr.bf16.mxu0 0
    %2848 = vmatpush2.bf16.msra.mxu0 0
    %2849 = vmatprep.subr.bf16.mxu0 0
    %2850 = vmatpush2.bf16.msra.mxu0 0
    %2851 = vmatprep.subr.bf16.mxu0 0
    %2852 = vmatpush2.bf16.msra.mxu0 0
    %2853 = vmatprep.subr.bf16.mxu0 0
    %2854 = vmatpush2.bf16.msra.mxu0 0
    %2855 = vmatprep.mubr.bf16.mxu0 0
    %2856 = vmatmul.mubr.bf16.gmra.mxu0 %v2122
    %v2857 = vpop.f32.mrf.mxu0
    %v2858 = vadd.f32 %v2793, %v2857
    %v2859 = vpop.f32.mrf.mxu0
    %v2860 = vpop.f32.mrf.mxu0
    %v2861 = vadd.f32 %v2796, %v2860
    %v2862 = vpop.f32.mrf.mxu0
    %2863 = vmatprep.mubr.bf16.mxu0 0
    %2864 = vmatmul.mubr.bf16.gmra.mxu0 %v2125
    %v2865 = vpop.f32.mrf.mxu0
    %v2866 = vadd.f32 %v2801, %v2865
    %v2867 = vpop.f32.mrf.mxu0
    %v2868 = vpop.f32.mrf.mxu0
    %v2869 = vadd.f32 %v2804, %v2868
    %v2870 = vpop.f32.mrf.mxu0
    %2871 = vmatprep.mubr.bf16.mxu0 0
    %2872 = vmatmul.mubr.bf16.gmra.mxu0 %v2128
    %v2873 = vpop.f32.mrf.mxu0
    %v2874 = vadd.f32 %v2809, %v2873
    %v2875 = vpop.f32.mrf.mxu0
    %v2876 = vpop.f32.mrf.mxu0
    %v2877 = vadd.f32 %v2812, %v2876
    %v2878 = vpop.f32.mrf.mxu0
    %2879 = vmatprep.mubr.bf16.mxu0 0
    %2880 = vmatmul.mubr.bf16.gmra.mxu0 %v2131
    %v2881 = vpop.f32.mrf.mxu0
    %v2882 = vadd.f32 %v2817, %v2881
    %v2883 = vpop.f32.mrf.mxu0
    %v2884 = vpop.f32.mrf.mxu0
    %v2885 = vadd.f32 %v2820, %v2884
    %v2886 = vpop.f32.mrf.mxu0
    %2887 = vdwg.mxu0
    %vm2888 = vcmask 261120
    %v2889 = vsel %vm2888, %v2720, -inf
    %v2890 = vrot.slane %v2889, 4
    %v2891 = vmax.f32 %v2889, %v2890
    %v2892 = vrot.slane %v2891, 2
    %v2893 = vmax.f32 %v2891, %v2892
    %v2894 = vrot.slane %v2893, 1
    %v2895 = vmax.f32 %v2893, %v2894
    %v2896 = vsel %vm2888, %v2724, -inf
    %v2897 = vrot.slane %v2896, 4
    %v2898 = vmax.f32 %v2896, %v2897
    %v2899 = vrot.slane %v2898, 2
    %v2900 = vmax.f32 %v2898, %v2899
    %v2901 = vrot.slane %v2900, 1
    %v2902 = vmax.f32 %v2900, %v2901
    %v2903 = vsel %vm2888, %v2730, -inf
    %v2904 = vrot.slane %v2903, 4
    %v2905 = vmax.f32 %v2903, %v2904
    %v2906 = vrot.slane %v2905, 2
    %v2907 = vmax.f32 %v2905, %v2906
    %v2908 = vrot.slane %v2907, 1
    %v2909 = vmax.f32 %v2907, %v2908
    %v2910 = vsel %vm2888, %v2734, -inf
    %v2911 = vrot.slane %v2910, 4
    %v2912 = vmax.f32 %v2910, %v2911
    %v2913 = vrot.slane %v2912, 2
    %v2914 = vmax.f32 %v2912, %v2913
    %v2915 = vrot.slane %v2914, 1
    %v2916 = vmax.f32 %v2914, %v2915
    %v2917 = vsel %vm2888, %v2740, -inf
    %v2918 = vrot.slane %v2917, 4
    %v2919 = vmax.f32 %v2917, %v2918
    %v2920 = vrot.slane %v2919, 2
    %v2921 = vmax.f32 %v2919, %v2920
    %v2922 = vrot.slane %v2921, 1
    %v2923 = vmax.f32 %v2921, %v2922
    %v2924 = vsel %vm2888, %v2744, -inf
    %v2925 = vrot.slane %v2924, 4
    %v2926 = vmax.f32 %v2924, %v2925
    %v2927 = vrot.slane %v2926, 2
    %v2928 = vmax.f32 %v2926, %v2927
    %v2929 = vrot.slane %v2928, 1
    %v2930 = vmax.f32 %v2928, %v2929
    %v2931 = vsel %vm2888, %v2750, -inf
    %v2932 = vrot.slane %v2931, 4
    %v2933 = vmax.f32 %v2931, %v2932
    %v2934 = vrot.slane %v2933, 2
    %v2935 = vmax.f32 %v2933, %v2934
    %v2936 = vrot.slane %v2935, 1
    %v2937 = vmax.f32 %v2935, %v2936
    %v2938 = vsel %vm2888, %v2754, -inf
    %v2939 = vrot.slane %v2938, 4
    %v2940 = vmax.f32 %v2938, %v2939
    %v2941 = vrot.slane %v2940, 2
    %v2942 = vmax.f32 %v2940, %v2941
    %v2943 = vrot.slane %v2942, 1
    %v2944 = vmax.f32 %v2942, %v2943
    %v2953 = vrot.slane %v2720, 1
    %v2954 = vrot.slane %v2724, 1
    %v2955 = vrot.slane %v2730, 1
    %v2956 = vrot.slane %v2734, 1
    %v2957 = vrot.slane %v2740, 1
    %v2958 = vrot.slane %v2744, 1
    %v2959 = vrot.slane %v2750, 1
    %v2960 = vrot.slane %v2754, 1
    %2961 = vrot.lane.b32.xlu0 %v2953, 96
    %v2962 = vpop.permute.xlu0 %2961
    %2963 = vrot.lane.b32.xlu0 %v2954, 96
    %v2964 = vpop.permute.xlu0 %2963
    %2965 = vrot.lane.b32.xlu0 %v2955, 96
    %v2966 = vpop.permute.xlu0 %2965
    %2967 = vrot.lane.b32.xlu0 %v2956, 96
    %v2968 = vpop.permute.xlu0 %2967
    %2969 = vrot.lane.b32.xlu0 %v2957, 96
    %v2970 = vpop.permute.xlu0 %2969
    %2971 = vrot.lane.b32.xlu0 %v2958, 96
    %v2972 = vpop.permute.xlu0 %2971
    %2973 = vrot.lane.b32.xlu0 %v2959, 96
    %v2974 = vpop.permute.xlu0 %2973
    %2975 = vrot.lane.b32.xlu0 %v2960, 96
    %v2976 = vpop.permute.xlu0 %2975
    %v2985 = vadd.f32 %v2720, %v2962
    %v2986 = vadd.f32 %v2724, %v2964
    %v2987 = vadd.f32 %v2730, %v2966
    %v2988 = vadd.f32 %v2734, %v2968
    %v2989 = vadd.f32 %v2740, %v2970
    %v2990 = vadd.f32 %v2744, %v2972
    %v2991 = vadd.f32 %v2750, %v2974
    %v2992 = vadd.f32 %v2754, %v2976
    %vm2993 = vcmask 522496
    %v2994 = vsel %vm2993, %v2985, -inf
    %v2995 = vrot.slane %v2994, 4
    %v2996 = vmax.f32 %v2994, %v2995
    %v2997 = vrot.slane %v2996, 2
    %v2998 = vmax.f32 %v2996, %v2997
    %v2999 = vrot.slane %v2998, 1
    %v3000 = vmax.f32 %v2998, %v2999
    %v3001 = vsel %vm2993, %v2986, -inf
    %v3002 = vrot.slane %v3001, 4
    %v3003 = vmax.f32 %v3001, %v3002
    %v3004 = vrot.slane %v3003, 2
    %v3005 = vmax.f32 %v3003, %v3004
    %v3006 = vrot.slane %v3005, 1
    %v3007 = vmax.f32 %v3005, %v3006
    %v3008 = vsel %vm2993, %v2987, -inf
    %v3009 = vrot.slane %v3008, 4
    %v3010 = vmax.f32 %v3008, %v3009
    %v3011 = vrot.slane %v3010, 2
    %v3012 = vmax.f32 %v3010, %v3011
    %v3013 = vrot.slane %v3012, 1
    %v3014 = vmax.f32 %v3012, %v3013
    %v3015 = vsel %vm2993, %v2988, -inf
    %v3016 = vrot.slane %v3015, 4
    %v3017 = vmax.f32 %v3015, %v3016
    %v3018 = vrot.slane %v3017, 2
    %v3019 = vmax.f32 %v3017, %v3018
    %v3020 = vrot.slane %v3019, 1
    %v3021 = vmax.f32 %v3019, %v3020
    %v3022 = vsel %vm2993, %v2989, -inf
    %v3023 = vrot.slane %v3022, 4
    %v3024 = vmax.f32 %v3022, %v3023
    %v3025 = vrot.slane %v3024, 2
    %v3026 = vmax.f32 %v3024, %v3025
    %v3027 = vrot.slane %v3026, 1
    %v3028 = vmax.f32 %v3026, %v3027
    %v3029 = vsel %vm2993, %v2990, -inf
    %v3030 = vrot.slane %v3029, 4
    %v3031 = vmax.f32 %v3029, %v3030
    %v3032 = vrot.slane %v3031, 2
    %v3033 = vmax.f32 %v3031, %v3032
    %v3034 = vrot.slane %v3033, 1
    %v3035 = vmax.f32 %v3033, %v3034
    %v3036 = vsel %vm2993, %v2991, -inf
    %v3037 = vrot.slane %v3036, 4
    %v3038 = vmax.f32 %v3036, %v3037
    %v3039 = vrot.slane %v3038, 2
    %v3040 = vmax.f32 %v3038, %v3039
    %v3041 = vrot.slane %v3040, 1
    %v3042 = vmax.f32 %v3040, %v3041
    %v3043 = vsel %vm2993, %v2992, -inf
    %v3044 = vrot.slane %v3043, 4
    %v3045 = vmax.f32 %v3043, %v3044
    %v3046 = vrot.slane %v3045, 2
    %v3047 = vmax.f32 %v3045, %v3046
    %v3048 = vrot.slane %v3047, 1
    %v3049 = vmax.f32 %v3047, %v3048
    %v3058 = vrot.slane %v2722, 1
    %v3059 = vrot.slane %v2726, 1
    %v3060 = vrot.slane %v2732, 1
    %v3061 = vrot.slane %v2736, 1
    %v3062 = vrot.slane %v2742, 1
    %v3063 = vrot.slane %v2746, 1
    %v3064 = vrot.slane %v2752, 1
    %v3065 = vrot.slane %v2756, 1
    %3066 = vrot.lane.b32.xlu0 %v3058, 96
    %v3067 = vpop.permute.xlu0 %3066
    %3068 = vrot.lane.b32.xlu0 %v3059, 96
    %v3069 = vpop.permute.xlu0 %3068
    %3070 = vrot.lane.b32.xlu0 %v3060, 96
    %v3071 = vpop.permute.xlu0 %3070
    %3072 = vrot.lane.b32.xlu0 %v3061, 96
    %v3073 = vpop.permute.xlu0 %3072
    %3074 = vrot.lane.b32.xlu0 %v3062, 96
    %v3075 = vpop.permute.xlu0 %3074
    %3076 = vrot.lane.b32.xlu0 %v3063, 96
    %v3077 = vpop.permute.xlu0 %3076
    %3078 = vrot.lane.b32.xlu0 %v3064, 96
    %v3079 = vpop.permute.xlu0 %3078
    %3080 = vrot.lane.b32.xlu0 %v3065, 96
    %v3081 = vpop.permute.xlu0 %3080
    %v3090 = vadd.f32 %v2720, %v3067
    %v3091 = vadd.f32 %v2724, %v3069
    %v3092 = vadd.f32 %v2730, %v3071
    %v3093 = vadd.f32 %v2734, %v3073
    %v3094 = vadd.f32 %v2740, %v3075
    %v3095 = vadd.f32 %v2744, %v3077
    %v3096 = vadd.f32 %v2750, %v3079
    %v3097 = vadd.f32 %v2754, %v3081
    %v3098 = vrot.slane %v2722, 2
    %v3099 = vrot.slane %v2726, 2
    %v3100 = vrot.slane %v2732, 2
    %v3101 = vrot.slane %v2736, 2
    %v3102 = vrot.slane %v2742, 2
    %v3103 = vrot.slane %v2746, 2
    %v3104 = vrot.slane %v2752, 2
    %v3105 = vrot.slane %v2756, 2
    %3106 = vrot.lane.b32.xlu0 %v3098, 64
    %v3107 = vpop.permute.xlu0 %3106
    %3108 = vrot.lane.b32.xlu0 %v3099, 64
    %v3109 = vpop.permute.xlu0 %3108
    %3110 = vrot.lane.b32.xlu0 %v3100, 64
    %v3111 = vpop.permute.xlu0 %3110
    %3112 = vrot.lane.b32.xlu0 %v3101, 64
    %v3113 = vpop.permute.xlu0 %3112
    %3114 = vrot.lane.b32.xlu0 %v3102, 64
    %v3115 = vpop.permute.xlu0 %3114
    %3116 = vrot.lane.b32.xlu0 %v3103, 64
    %v3117 = vpop.permute.xlu0 %3116
    %3118 = vrot.lane.b32.xlu0 %v3104, 64
    %v3119 = vpop.permute.xlu0 %3118
    %3120 = vrot.lane.b32.xlu0 %v3105, 64
    %v3121 = vpop.permute.xlu0 %3120
    %v3130 = vadd.f32 %v3090, %v3107
    %v3131 = vadd.f32 %v3091, %v3109
    %v3132 = vadd.f32 %v3092, %v3111
    %v3133 = vadd.f32 %v3093, %v3113
    %v3134 = vadd.f32 %v3094, %v3115
    %v3135 = vadd.f32 %v3095, %v3117
    %v3136 = vadd.f32 %v3096, %v3119
    %v3137 = vadd.f32 %v3097, %v3121
    %vm3138 = vcmask 1046272
    %v3139 = vsel %vm3138, %v3130, -inf
    %v3140 = vrot.slane %v3139, 4
    %v3141 = vmax.f32 %v3139, %v3140
    %v3142 = vrot.slane %v3141, 2
    %v3143 = vmax.f32 %v3141, %v3142
    %v3144 = vrot.slane %v3143, 1
    %v3145 = vmax.f32 %v3143, %v3144
    %v3146 = vsel %vm3138, %v3131, -inf
    %v3147 = vrot.slane %v3146, 4
    %v3148 = vmax.f32 %v3146, %v3147
    %v3149 = vrot.slane %v3148, 2
    %v3150 = vmax.f32 %v3148, %v3149
    %v3151 = vrot.slane %v3150, 1
    %v3152 = vmax.f32 %v3150, %v3151
    %v3153 = vsel %vm3138, %v3132, -inf
    %v3154 = vrot.slane %v3153, 4
    %v3155 = vmax.f32 %v3153, %v3154
    %v3156 = vrot.slane %v3155, 2
    %v3157 = vmax.f32 %v3155, %v3156
    %v3158 = vrot.slane %v3157, 1
    %v3159 = vmax.f32 %v3157, %v3158
    %v3160 = vsel %vm3138, %v3133, -inf
    %v3161 = vrot.slane %v3160, 4
    %v3162 = vmax.f32 %v3160, %v3161
    %v3163 = vrot.slane %v3162, 2
    %v3164 = vmax.f32 %v3162, %v3163
    %v3165 = vrot.slane %v3164, 1
    %v3166 = vmax.f32 %v3164, %v3165
    %v3167 = vsel %vm3138, %v3134, -inf
    %v3168 = vrot.slane %v3167, 4
    %v3169 = vmax.f32 %v3167, %v3168
    %v3170 = vrot.slane %v3169, 2
    %v3171 = vmax.f32 %v3169, %v3170
    %v3172 = vrot.slane %v3171, 1
    %v3173 = vmax.f32 %v3171, %v3172
    %v3174 = vsel %vm3138, %v3135, -inf
    %v3175 = vrot.slane %v3174, 4
    %v3176 = vmax.f32 %v3174, %v3175
    %v3177 = vrot.slane %v3176, 2
    %v3178 = vmax.f32 %v3176, %v3177
    %v3179 = vrot.slane %v3178, 1
    %v3180 = vmax.f32 %v3178, %v3179
    %v3181 = vsel %vm3138, %v3136, -inf
    %v3182 = vrot.slane %v3181, 4
    %v3183 = vmax.f32 %v3181, %v3182
    %v3184 = vrot.slane %v3183, 2
    %v3185 = vmax.f32 %v3183, %v3184
    %v3186 = vrot.slane %v3185, 1
    %v3187 = vmax.f32 %v3185, %v3186
    %v3188 = vsel %vm3138, %v3137, -inf
    %v3189 = vrot.slane %v3188, 4
    %v3190 = vmax.f32 %v3188, %v3189
    %v3191 = vrot.slane %v3190, 2
    %v3192 = vmax.f32 %v3190, %v3191
    %v3193 = vrot.slane %v3192, 1
    %v3194 = vmax.f32 %v3192, %v3193
    %v3195 = vadd.f32 %v2722, %v3067
    %v3196 = vadd.f32 %v2726, %v3069
    %v3197 = vadd.f32 %v2732, %v3071
    %v3198 = vadd.f32 %v2736, %v3073
    %v3199 = vadd.f32 %v2742, %v3075
    %v3200 = vadd.f32 %v2746, %v3077
    %v3201 = vadd.f32 %v2752, %v3079
    %v3202 = vadd.f32 %v2756, %v3081
    %v3211 = vrot.slane %v2858, 2
    %v3212 = vrot.slane %v2861, 2
    %v3213 = vrot.slane %v2866, 2
    %v3214 = vrot.slane %v2869, 2
    %v3215 = vrot.slane %v2874, 2
    %v3216 = vrot.slane %v2877, 2
    %v3217 = vrot.slane %v2882, 2
    %v3218 = vrot.slane %v2885, 2
    %3219 = vrot.lane.b32.xlu0 %v3211, 64
    %v3220 = vpop.permute.xlu0 %3219
    %3221 = vrot.lane.b32.xlu0 %v3212, 64
    %v3222 = vpop.permute.xlu0 %3221
    %3223 = vrot.lane.b32.xlu0 %v3213, 64
    %v3224 = vpop.permute.xlu0 %3223
    %3225 = vrot.lane.b32.xlu0 %v3214, 64
    %v3226 = vpop.permute.xlu0 %3225
    %3227 = vrot.lane.b32.xlu0 %v3215, 64
    %v3228 = vpop.permute.xlu0 %3227
    %3229 = vrot.lane.b32.xlu0 %v3216, 64
    %v3230 = vpop.permute.xlu0 %3229
    %3231 = vrot.lane.b32.xlu0 %v3217, 64
    %v3232 = vpop.permute.xlu0 %3231
    %3233 = vrot.lane.b32.xlu0 %v3218, 64
    %v3234 = vpop.permute.xlu0 %3233
    %v3243 = vadd.f32 %v3195, %v3220
    %v3244 = vadd.f32 %v3196, %v3222
    %v3245 = vadd.f32 %v3197, %v3224
    %v3246 = vadd.f32 %v3198, %v3226
    %v3247 = vadd.f32 %v3199, %v3228
    %v3248 = vadd.f32 %v3200, %v3230
    %v3249 = vadd.f32 %v3201, %v3232
    %v3250 = vadd.f32 %v3202, %v3234
    %v3251 = vrot.slane %v2858, 3
    %v3252 = vrot.slane %v2861, 3
    %v3253 = vrot.slane %v2866, 3
    %v3254 = vrot.slane %v2869, 3
    %v3255 = vrot.slane %v2874, 3
    %v3256 = vrot.slane %v2877, 3
    %v3257 = vrot.slane %v2882, 3
    %v3258 = vrot.slane %v2885, 3
    %3259 = vrot.lane.b32.xlu0 %v3251, 32
    %v3260 = vpop.permute.xlu0 %3259
    %3261 = vrot.lane.b32.xlu0 %v3252, 32
    %v3262 = vpop.permute.xlu0 %3261
    %3263 = vrot.lane.b32.xlu0 %v3253, 32
    %v3264 = vpop.permute.xlu0 %3263
    %3265 = vrot.lane.b32.xlu0 %v3254, 32
    %v3266 = vpop.permute.xlu0 %3265
    %3267 = vrot.lane.b32.xlu0 %v3255, 32
    %v3268 = vpop.permute.xlu0 %3267
    %3269 = vrot.lane.b32.xlu0 %v3256, 32
    %v3270 = vpop.permute.xlu0 %3269
    %3271 = vrot.lane.b32.xlu0 %v3257, 32
    %v3272 = vpop.permute.xlu0 %3271
    %3273 = vrot.lane.b32.xlu0 %v3258, 32
    %v3274 = vpop.permute.xlu0 %3273
    %v3283 = vadd.f32 %v3243, %v3260
    %v3284 = vadd.f32 %v3244, %v3262
    %v3285 = vadd.f32 %v3245, %v3264
    %v3286 = vadd.f32 %v3246, %v3266
    %v3287 = vadd.f32 %v3247, %v3268
    %v3288 = vadd.f32 %v3248, %v3270
    %v3289 = vadd.f32 %v3249, %v3272
    %v3290 = vadd.f32 %v3250, %v3274
    %v3291 = vrot.slane %v2858, 4
    %v3292 = vrot.slane %v2861, 4
    %v3293 = vrot.slane %v2866, 4
    %v3294 = vrot.slane %v2869, 4
    %v3295 = vrot.slane %v2874, 4
    %v3296 = vrot.slane %v2877, 4
    %v3297 = vrot.slane %v2882, 4
    %v3298 = vrot.slane %v2885, 4
    %v3307 = vadd.f32 %v3283, %v3291
    %v3308 = vadd.f32 %v3284, %v3292
    %v3309 = vadd.f32 %v3285, %v3293
    %v3310 = vadd.f32 %v3286, %v3294
    %v3311 = vadd.f32 %v3287, %v3295
    %v3312 = vadd.f32 %v3288, %v3296
    %v3313 = vadd.f32 %v3289, %v3297
    %v3314 = vadd.f32 %v3290, %v3298
    %vm3315 = vcmask 781824
    %v3316 = vsel %vm3315, %v3307, -inf
    %v3317 = vrot.slane %v3316, 4
    %v3318 = vmax.f32 %v3316, %v3317
    %v3319 = vrot.slane %v3318, 2
    %v3320 = vmax.f32 %v3318, %v3319
    %v3321 = vrot.slane %v3320, 1
    %v3322 = vmax.f32 %v3320, %v3321
    %v3323 = vsel %vm3315, %v3308, -inf
    %v3324 = vrot.slane %v3323, 4
    %v3325 = vmax.f32 %v3323, %v3324
    %v3326 = vrot.slane %v3325, 2
    %v3327 = vmax.f32 %v3325, %v3326
    %v3328 = vrot.slane %v3327, 1
    %v3329 = vmax.f32 %v3327, %v3328
    %v3330 = vsel %vm3315, %v3309, -inf
    %v3331 = vrot.slane %v3330, 4
    %v3332 = vmax.f32 %v3330, %v3331
    %v3333 = vrot.slane %v3332, 2
    %v3334 = vmax.f32 %v3332, %v3333
    %v3335 = vrot.slane %v3334, 1
    %v3336 = vmax.f32 %v3334, %v3335
    %v3337 = vsel %vm3315, %v3310, -inf
    %v3338 = vrot.slane %v3337, 4
    %v3339 = vmax.f32 %v3337, %v3338
    %v3340 = vrot.slane %v3339, 2
    %v3341 = vmax.f32 %v3339, %v3340
    %v3342 = vrot.slane %v3341, 1
    %v3343 = vmax.f32 %v3341, %v3342
    %v3344 = vsel %vm3315, %v3311, -inf
    %v3345 = vrot.slane %v3344, 4
    %v3346 = vmax.f32 %v3344, %v3345
    %v3347 = vrot.slane %v3346, 2
    %v3348 = vmax.f32 %v3346, %v3347
    %v3349 = vrot.slane %v3348, 1
    %v3350 = vmax.f32 %v3348, %v3349
    %v3351 = vsel %vm3315, %v3312, -inf
    %v3352 = vrot.slane %v3351, 4
    %v3353 = vmax.f32 %v3351, %v3352
    %v3354 = vrot.slane %v3353, 2
    %v3355 = vmax.f32 %v3353, %v3354
    %v3356 = vrot.slane %v3355, 1
    %v3357 = vmax.f32 %v3355, %v3356
    %v3358 = vsel %vm3315, %v3313, -inf
    %v3359 = vrot.slane %v3358, 4
    %v3360 = vmax.f32 %v3358, %v3359
    %v3361 = vrot.slane %v3360, 2
    %v3362 = vmax.f32 %v3360, %v3361
    %v3363 = vrot.slane %v3362, 1
    %v3364 = vmax.f32 %v3362, %v3363
    %v3365 = vsel %vm3315, %v3314, -inf
    %v3366 = vrot.slane %v3365, 4
    %v3367 = vmax.f32 %v3365, %v3366
    %v3368 = vrot.slane %v3367, 2
    %v3369 = vmax.f32 %v3367, %v3368
    %v3370 = vrot.slane %v3369, 1
    %v3371 = vmax.f32 %v3369, %v3370
    %vm3380 = vcmask 1041409
    %v3381 = vsel %vm3380, %v2902, %v2895
    %vm3382 = vcmask 1042434
    %v3383 = vsel %vm3382, %v2909, %v3381
    %vm3384 = vcmask 1043459
    %v3385 = vsel %vm3384, %v2916, %v3383
    %vm3386 = vcmask 1044484
    %v3387 = vsel %vm3386, %v2923, %v3385
    %vm3388 = vcmask 1045509
    %v3389 = vsel %vm3388, %v2930, %v3387
    %vm3390 = vcmask 1046534
    %v3391 = vsel %vm3390, %v2937, %v3389
    %vm3392 = vcmask 1047559
    %v3393 = vsel %vm3392, %v2944, %v3391
    %v3403 = vsel %vm3380, %v3007, %v3000
    %v3404 = vsel %vm3382, %v3014, %v3403
    %v3405 = vsel %vm3384, %v3021, %v3404
    %v3406 = vsel %vm3386, %v3028, %v3405
    %v3407 = vsel %vm3388, %v3035, %v3406
    %v3408 = vsel %vm3390, %v3042, %v3407
    %v3409 = vsel %vm3392, %v3049, %v3408
    %v3419 = vsel %vm3380, %v3152, %v3145
    %v3420 = vsel %vm3382, %v3159, %v3419
    %v3421 = vsel %vm3384, %v3166, %v3420
    %v3422 = vsel %vm3386, %v3173, %v3421
    %v3423 = vsel %vm3388, %v3180, %v3422
    %v3424 = vsel %vm3390, %v3187, %v3423
    %v3425 = vsel %vm3392, %v3194, %v3424
    %3426 = vrot.lane.b32.xlu0 %v3425, 96
    %v3427 = vpop.permute.xlu0 %3426
    %v3437 = vsel %vm3380, %v3329, %v3322
    %v3438 = vsel %vm3382, %v3336, %v3437
    %v3439 = vsel %vm3384, %v3343, %v3438
    %v3440 = vsel %vm3386, %v3350, %v3439
    %v3441 = vsel %vm3388, %v3357, %v3440
    %v3442 = vsel %vm3390, %v3364, %v3441
    %v3443 = vsel %vm3392, %v3371, %v3442
    %3444 = vrot.lane.b32.xlu0 %v3443, 32
    %v3445 = vpop.permute.xlu0 %3444
    %v3447 = vsel %vm2888, %v3393, %v3409
    %vm3448 = vcmask 523264
    %v3449 = vsel %vm3448, %v3447, %v3427
    %vm3450 = vcmask 785408
    %v3451 = vsel %vm3450, %v3449, %v3445
    %v3452 = vld [vmem:[%s4] sm:$0x1]
    %v3454 = vlaneseq
    %v3455 = vshrl.u32 %v3454, 7
    %v3456 = vsub.s32 0, %v3455
    %v3457 = vrot.slane %v3452, %v3456
    %v3459 = vadd.f32 %v3451, %v3457
    %v3460 = vmax.f32 %v3459, 0.0
    %v3461 = vpack.c.bf16 %v3460, %v3460
    %v3462 = vld [vmem:[%s5] sm:$0xf]
    %v3463 = vld [vmem:[%s5 + $0x4] sm:$0xf]
    %v3464 = vld [vmem:[%s5 + $0x8] sm:$0xf]
    %v3465 = vld [vmem:[%s5 + $0xc] sm:$0xf]
    %v3466 = vld [vmem:[%s5 + $0x10] sm:$0xf]
    %v3467 = vld [vmem:[%s5 + $0x14] sm:$0xf]
    %v3468 = vld [vmem:[%s5 + $0x18] sm:$0xf]
    %v3469 = vld [vmem:[%s5 + $0x1c] sm:$0xf]
    %v3470 = vld [vmem:[%s5 + $0x20] sm:$0xf]
    %v3471 = vld [vmem:[%s5 + $0x24] sm:$0xf]
    %v3472 = vld [vmem:[%s5 + $0x28] sm:$0xf]
    %v3473 = vld [vmem:[%s5 + $0x2c] sm:$0xf]
    %v3474 = vld [vmem:[%s5 + $0x30] sm:$0xf]
    %v3475 = vld [vmem:[%s5 + $0x34] sm:$0xf]
    %v3476 = vld [vmem:[%s5 + $0x38] sm:$0xf]
    %v3477 = vld [vmem:[%s5 + $0x3c] sm:$0xf]
    %v3478 = vld [vmem:[%s6] sm:$0x1]
    %v3480 = vlaneseq
    %v3481 = vshrl.u32 %v3480, 7
    %v3482 = vsub.s32 0, %v3481
    %v3483 = vrot.slane %v3478, %v3482
    %v3501 = vunpack.c.l.b16 %v3462
    %v3502 = vunpack.c.l.b16 %v3463
    %v3503 = vunpack.c.l.b16 %v3464
    %v3504 = vunpack.c.l.b16 %v3465
    %v3505 = vunpack.c.l.b16 %v3466
    %v3506 = vunpack.c.l.b16 %v3467
    %v3507 = vunpack.c.l.b16 %v3468
    %v3508 = vunpack.c.l.b16 %v3469
    %v3509 = vunpack.c.l.b16 %v3470
    %v3510 = vunpack.c.l.b16 %v3471
    %v3511 = vunpack.c.l.b16 %v3472
    %v3512 = vunpack.c.l.b16 %v3473
    %v3513 = vunpack.c.l.b16 %v3474
    %v3514 = vunpack.c.l.b16 %v3475
    %v3515 = vunpack.c.l.b16 %v3476
    %v3516 = vunpack.c.l.b16 %v3477
    %v3517 = vpack.c.b16 %v3502, %v3501
    %v3518 = vpack.c.b16 %v3504, %v3503
    %v3519 = vpack.c.b16 %v3506, %v3505
    %v3520 = vpack.c.b16 %v3508, %v3507
    %v3521 = vpack.c.b16 %v3510, %v3509
    %v3522 = vpack.c.b16 %v3512, %v3511
    %v3523 = vpack.c.b16 %v3514, %v3513
    %v3524 = vpack.c.b16 %v3516, %v3515
    %3533 = vmatprep.subr.bf16.mxu0 0
    %3534 = vmatpush1.bf16.msra.mxu0 %v3524
    %3535 = vmatprep.subr.bf16.mxu0 0
    %3536 = vmatpush1.bf16.msra.mxu0 %v3523
    %3537 = vmatprep.subr.bf16.mxu0 0
    %3538 = vmatpush1.bf16.msra.mxu0 %v3522
    %3539 = vmatprep.subr.bf16.mxu0 0
    %3540 = vmatpush1.bf16.msra.mxu0 %v3521
    %3541 = vmatprep.subr.bf16.mxu0 0
    %3542 = vmatpush1.bf16.msra.mxu0 %v3520
    %3543 = vmatprep.subr.bf16.mxu0 0
    %3544 = vmatpush1.bf16.msra.mxu0 %v3519
    %3545 = vmatprep.subr.bf16.mxu0 0
    %3546 = vmatpush1.bf16.msra.mxu0 %v3518
    %3547 = vmatprep.subr.bf16.mxu0 0
    %3548 = vmatpush1.bf16.msra.mxu0 %v3517
    %3549 = vmatprep.subr.bf16.mxu0 0
    %3550 = vmatpush2.bf16.msra.mxu0 0
    %3551 = vmatprep.subr.bf16.mxu0 0
    %3552 = vmatpush2.bf16.msra.mxu0 0
    %3553 = vmatprep.subr.bf16.mxu0 0
    %3554 = vmatpush2.bf16.msra.mxu0 0
    %3555 = vmatprep.subr.bf16.mxu0 0
    %3556 = vmatpush2.bf16.msra.mxu0 0
    %3557 = vmatprep.subr.bf16.mxu0 0
    %3558 = vmatpush2.bf16.msra.mxu0 0
    %3559 = vmatprep.subr.bf16.mxu0 0
    %3560 = vmatpush2.bf16.msra.mxu0 0
    %3561 = vmatprep.subr.bf16.mxu0 0
    %3562 = vmatpush2.bf16.msra.mxu0 0
    %3563 = vmatprep.subr.bf16.mxu0 0
    %3564 = vmatpush2.bf16.msra.mxu0 0
    %3565 = vmatprep.mubr.bf16.mxu0 0
    %3566 = vmatmul.mubr.bf16.gmra.mxu0 %v3461
    %v3567 = vpop.f32.mrf.mxu0
    %v3568 = vadd.f32 %v3483, %v3567
    %v3569 = vpop.f32.mrf.mxu0
    %v3570 = vpop.f32.mrf.mxu0
    %v3571 = vpop.f32.mrf.mxu0
    %3572 = vdwg.mxu0
    %v3573 = vxor.u32 %v3568, 2147483648
    %v3574 = vmul.f32 %v3573, 1.442695
    %v3575 = vpow.pop %v3574
    %v3576 = vadd.f32 %v3575, 1.0
    %v3577 = vrcp.pop %v3576
    %v3578 = vmul.f32 1.0, %v3577
    %3579 = vst [vmem:[%s7] sm:$0xff] %v3578
    // Predicated region
    $region38: #{textcnn_forward.1} parent=1 // pred_check
      _
    $region39: #{textcnn_forward.1} parent=1 // pred_check_branch
      %3581 = sbr.rel (0) target = $region41
    $region40: #{textcnn_forward.1} parent=1 // pred_region
      _
    $region41: #{textcnn_forward.1} parent=1 // pred_fallthru
      _
    // Predicated region
    $region42: #{textcnn_forward.1} parent=1 // pred_check
      _
    $region43: #{textcnn_forward.1} parent=1 // pred_check_branch
      %3583 = sbr.rel (0) target = $region45
    $region44: #{textcnn_forward.1} parent=1 // pred_region
      _
    $region45: #{textcnn_forward.1} parent=1 // pred_fallthru
      _
    %3584 = vsyncpa [#allocation3], 1
    %3585 = vsyncpa [#allocation5], 1

</llo_original>
